<compile_context>
chip_gen: v6e
topology: v6e:2x2x1
jax: 0.10.0
libtpu: 0.0.40
codegen_flags: <defaults>
</compile_context>

<pallas_src>
import functools
import math

import jax
import jax.numpy as jnp
from jax import lax
from jax.experimental import pallas as pl
from jax.experimental.pallas import tpu as pltpu


_TM_MAX = 256   # target batch tile (amortizes w_enc re-streaming)
_TC_MAX = 2048  # cap on head C-chunk width


def _round_up(x, m):
    return (x + m - 1) // m * m


def _tpu_vmem_cap():
    cap = 64 << 20  # conservative default = v7x physical VMEM per TensorCore
    try:
        info = pltpu.get_tpu_info()
        cap = int(getattr(info, "vmem_capacity_bytes", cap))
    except Exception:
        pass
    return cap


def _resident_bytes(tm, tk, D_pad, tc, with_features):
    """Estimate of the kernel's resident VMEM footprint."""
    return (2 * tm * tk * 4                    # x tiles (f32, double-buffered)
            + 2 * tk * D_pad * 2               # w_enc tiles (bf16, DB)
            + 2 * D_pad * 4                    # b_enc
            + 2 * (D_pad * tc * 2 + tc * 4)    # w_head chunk + b_head (worst: DB)
            + 2 * tm * tc * 4                  # logits output tiles
            + (2 * tm * D_pad * 4 if with_features else 0)   # features output
            + tm * D_pad * 4                   # f32 accumulator scratch
            + tm * D_pad * 2)                  # bf16 feature scratch


def _plan(P, D, C):
    """Batch-independent tiling plan, shared by prepare_params and forward."""
    D_pad = _round_up(D, 128)
    C_lane = _round_up(C, 128)

    # Head C-chunk: lane-dense, bounded so a double-buffered chunk stays ~<=8 MiB
    # even for very large heads / feature dims (critical on v7x's 64 MiB VMEM).
    tc_cap = max(128, (8 << 20) // (D_pad * 2) // 128 * 128)
    tc = min(C_lane, _TC_MAX, tc_cap)
    C_pad = _round_up(C_lane, tc)
    nc = C_pad // tc

    cap = _tpu_vmem_cap()
    budget = int(cap * 0.6)                    # headroom below physical VMEM
    P_lane = _round_up(P, 128)

    tk = min(128, P_lane)
    for cand in (2048, 1024, 512, 256, 128):   # big k-tiles on 128 MiB parts,
        cand = min(cand, P_lane)               # smaller on v7x's 64 MiB
        if _resident_bytes(_TM_MAX, cand, D_pad, tc, True) <= budget:
            tk = cand
            break
    P_pad = _round_up(P, tk)
    nk = P_pad // tk
    return dict(D_pad=D_pad, C_pad=C_pad, tc=tc, nc=nc, tk=tk, P_pad=P_pad,
                nk=nk, vmem_cap=cap)


# ---------------------------------------------------------------------------
# Fused kernel.
# Grid = (batch tiles, nk + nc - 1):
#   k in [0, nk)         : accumulate encoder matmul over P tiles (f32 acc)
#   k == nk - 1          : add bias, optional L2-normalize, emit features
#   k in [nk-1, nk+nc-1) : emit one C-chunk of the classification head
# (step nk-1 does the finalize AND head-chunk 0, so no grid step is wasted.)
# ---------------------------------------------------------------------------
def _model_wrapper_kernel(x_ref, wenc_ref, benc_ref, wheadT_ref, bhead_ref,
                          logits_ref, *rest, nk, normalize, with_features):
    if with_features:
        feat_ref, acc_ref, featb_ref = rest
    else:
        acc_ref, featb_ref = rest

    k = pl.program_id(1)

    @pl.when(k == 0)
    def _():
        acc_ref[...] = jnp.zeros_like(acc_ref)

    @pl.when(k < nk)
    def _():
        # encode_image: f32 activations cast to bf16 in-kernel (no wrapper-side
        # pad+cast pass), bf16 MXU matmul with f32 accumulation.
        acc_ref[...] += jnp.dot(x_ref[...].astype(jnp.bfloat16), wenc_ref[...],
                                preferred_element_type=jnp.float32)

    @pl.when(k == nk - 1)
    def _():
        # Finalize features, writing through refs (no large f32 temporaries).
        acc_ref[...] += benc_ref[...]
        if normalize:
            # features / ||features||.  Tiny clamp only guards the all-zero
            # padded rows (real rows are unaffected).
            inv = lax.rsqrt(jnp.maximum(
                jnp.sum(acc_ref[...] * acc_ref[...], axis=-1, keepdims=True),
                1e-24))
            acc_ref[...] = acc_ref[...] * inv
        if with_features:
            feat_ref[...] = acc_ref[...]
        featb_ref[...] = acc_ref[...].astype(jnp.bfloat16)

    @pl.when(k >= nk - 1)
    def _():
        # classification_head on the current C-chunk: plain [M,K]x[K,N] MXU
        # matmul on the pre-transposed weight (weight-stationary feed).
        logits_ref[...] = (
            jnp.dot(featb_ref[...], wheadT_ref[...],
                    preferred_element_type=jnp.float32) + bhead_ref[...])


# ---------------------------------------------------------------------------
# One-time parameter staging (outside the hot path).
# ---------------------------------------------------------------------------
def prepare_params(w_enc, b_enc, w_head, b_head):
    """Pad + cast the weights ONCE: bf16 MXU operands, lane-dense 128-padded
    last dims, head weight pre-transposed to [D, C]."""
    P, D = int(w_enc.shape[0]), int(w_enc.shape[1])
    C = int(w_head.shape[0])
    plan = _plan(P, D, C)
    P_pad, D_pad, C_pad = plan["P_pad"], plan["D_pad"], plan["C_pad"]

    w_enc_p = jnp.zeros((P_pad, D_pad), jnp.bfloat16).at[:P, :D].set(
        w_enc.astype(jnp.bfloat16))
    b_enc_p = jnp.zeros((1, D_pad), jnp.float32).at[0, :D].set(
        b_enc.astype(jnp.float32))
    w_headT_p = jnp.zeros((D_pad, C_pad), jnp.bfloat16).at[:D, :C].set(
        w_head.T.astype(jnp.bfloat16))
    b_head_p = jnp.zeros((1, C_pad), jnp.float32).at[0, :C].set(
        b_head.astype(jnp.float32))

    return dict(w_enc=w_enc_p, b_enc=b_enc_p, w_headT=w_headT_p,
                b_head=b_head_p, P=P, D=D, C=C, plan=plan)


# ---------------------------------------------------------------------------
# Forward wrapper (JAX/Pallas equivalent of ModelWrapper.forward).
# ---------------------------------------------------------------------------
def model_wrapper_forward(images, params, *, normalize=False,
                          return_features=False):
    plan = params["plan"]
    P, D, C = params["P"], params["D"], params["C"]
    D_pad, C_pad = plan["D_pad"], plan["C_pad"]
    tc, nc, tk, P_pad, nk = (plan["tc"], plan["nc"], plan["tk"],
                             plan["P_pad"], plan["nk"])

    B = int(images.shape[0])
    assert int(images.shape[1] * images.shape[2] * images.shape[3]) == P

    # ---- batch tile: as large as possible (amortizes w_enc re-streaming) but
    # split into >= 2 tiles whenever the batch allows so both v7x TCs get work.
    SUB = 8  # f32 sublane pack
    tm = _TM_MAX if B > _TM_MAX else _round_up(B, SUB)
    B_pad = _round_up(B, tm)
    if B_pad // tm < 2 and B > SUB:
        tm = _round_up(-(-B // 2), SUB)
        B_pad = _round_up(B, tm)

    # ---- activations stay f32 (cast to bf16 in-kernel); pad only if needed.
    x = images.reshape(B, P).astype(jnp.float32)
    if (B_pad, P_pad) != (B, P):
        x = jnp.pad(x, ((0, B_pad - B), (0, P_pad - P)))

    grid = (B_pad // tm, nk + nc - 1)
    nk_m1 = nk - 1

    if nc == 1:
        # Degenerate (single head chunk): trivial index maps.
        x_map = lambda i, k: (i, k)
        wenc_map = lambda i, k: (k, 0)
        whead_map = lambda i, k: (0, 0)
        bhead_map = lambda i, k: (0, 0)
        logits_map = lambda i, k: (i, 0)
    else:
        x_map = lambda i, k: (i, jnp.minimum(k, nk_m1))
        wenc_map = lambda i, k: (jnp.minimum(k, nk_m1), 0)
        whead_map = lambda i, k: (0, jnp.maximum(k - nk_m1, 0))
        bhead_map = lambda i, k: (0, jnp.maximum(k - nk_m1, 0))
        logits_map = lambda i, k: (i, jnp.maximum(k - nk_m1, 0))
    benc_map = lambda i, k: (0, 0)
    feat_map = lambda i, k: (i, 0)

    kernel = functools.partial(_model_wrapper_kernel, nk=nk,
                               normalize=normalize,
                               with_features=return_features)

    out_shape = [jax.ShapeDtypeStruct((B_pad, C_pad), jnp.float32)]
    out_specs = [pl.BlockSpec((tm, tc), logits_map)]
    if return_features:
        out_shape.append(jax.ShapeDtypeStruct((B_pad, D_pad), jnp.float32))
        out_specs.append(pl.BlockSpec((tm, D_pad), feat_map))

    resident = _resident_bytes(tm, tk, D_pad, tc, return_features)
    vmem_limit = int(max(32 << 20,
                         min(int(resident * 1.5) + (4 << 20),
                             int(plan["vmem_cap"] * 0.75))))

    n_btiles = B_pad // tm
    cost = pl.CostEstimate(
        flops=2 * B_pad * P_pad * D_pad + 2 * B_pad * D_pad * C_pad,
        transcendentals=B_pad if normalize else 0,
        bytes_accessed=(B_pad * P_pad * 4
                        + n_btiles * P_pad * D_pad * 2   # w_enc re-streamed / batch tile
                        + n_btiles * D_pad * C_pad * 2   # w_head re-streamed / batch tile
                        + D_pad * 4 + C_pad * 4
                        + B_pad * C_pad * 4
                        + (B_pad * D_pad * 4 if return_features else 0)),
    )

    def run(single_buffer_consts):
        def const(varies):
            # Grid-constant operands: single-buffer to reclaim VMEM.  Operands
            # whose block index varies keep default double buffering.
            if single_buffer_consts and not varies:
                return dict(pipeline_mode=pl.Buffered(1))
            return {}

        return pl.pallas_call(
            kernel,
            out_shape=tuple(out_shape),
            grid_spec=pltpu.PrefetchScalarGridSpec(
                num_scalar_prefetch=0,
                grid=grid,
                in_specs=[
                    pl.BlockSpec((tm, tk), x_map),                        # x (f32)
                    pl.BlockSpec((tk, D_pad), wenc_map),                  # w_enc
                    pl.BlockSpec((1, D_pad), benc_map, **const(False)),   # b_enc
                    pl.BlockSpec((D_pad, tc), whead_map, **const(nc > 1)),  # w_head^T chunk
                    pl.BlockSpec((1, tc), bhead_map, **const(nc > 1)),      # b_head chunk
                ],
                out_specs=tuple(out_specs),
                scratch_shapes=[pltpu.VMEM((tm, D_pad), jnp.float32),   # f32 acc
                                pltpu.VMEM((tm, D_pad), jnp.bfloat16)], # bf16 feats
            ),
            compiler_params=pltpu.CompilerParams(
                dimension_semantics=("parallel", "arbitrary"),
                vmem_limit_bytes=vmem_limit,
            ),
            cost_estimate=cost,
        )(x, params["w_enc"], params["b_enc"], params["w_headT"],
          params["b_head"])

    try:
        outs = run(True)
    except Exception:
        # pipeline_mode single-buffering unsupported on this jax/backend combo:
        # fall back to default double buffering (correctness first).
        outs = run(False)

    logits = outs[0][:B, :C]
    if return_features:
        feats = outs[1][:B, :D]
        return logits, feats
    return logits


# ---------------------------------------------------------------------------
# Deterministic parameter construction (mirrors ModelWrapper.__init__)
# ---------------------------------------------------------------------------
def make_params(key, in_pixels, feature_dim, num_classes):
    k_enc, k_head = jax.random.split(key)

    # TODO(synk): the real model.encode_image backbone (e.g. CLIP) is external
    # to ModelWrapper and not reproducible here; stand-in linear encoder used.
    w_enc = jax.random.normal(k_enc, (in_pixels, feature_dim), jnp.float32) * 0.02
    b_enc = jnp.zeros((feature_dim,), jnp.float32)

    # classification_head: kaiming_uniform_(a=sqrt(5)) on zeros_like(weight)
    #  => bound = sqrt(6 / ((1 + a^2) * fan_in)) = 1 / sqrt(fan_in)
    bound = 1.0 / math.sqrt(feature_dim)
    w_head = jax.random.uniform(k_head, (num_classes, feature_dim),
                                jnp.float32, minval=-bound, maxval=bound)
    b_head = jnp.zeros((num_classes,), jnp.float32)   # bias zeroed in __init__
    return w_enc, b_enc, w_head, b_head


if __name__ == "__main__":
    # Small shapes consistent with the forward pass.
    B, C_in, H, W = 2, 4, 16, 16          # images: NCHW
    feature_dim = 32
    num_classes = 8
    P = C_in * H * W

    key = jax.random.PRNGKey(0)
    k_img, k_par = jax.random.split(key)

    images = jax.random.normal(k_img, (B, C_in, H, W), jnp.float32)
    w_enc, b_enc, w_head, b_head = make_params(k_par, P, feature_dim, num_classes)

    # Pad/cast the weights once, outside the hot path (perf feedback).
    params = prepare_params(w_enc, b_enc, w_head, b_head)

    # normalize=True path (returned features are the normalized ones, per spec)
    logits, feats = model_wrapper_forward(images, params,
                                          normalize=True, return_features=True)
    logits = jax.block_until_ready(logits)
    feats = jax.block_until_ready(feats)

    # Pure-JAX f32 reference of ModelWrapper.forward.
    x_flat = images.reshape(B, P)
    f_raw = x_flat @ w_enc + b_enc
    f_n = f_raw / jnp.linalg.norm(f_raw, axis=-1, keepdims=True)
    logits_ref = f_n @ w_head.T + b_head

    # bf16 MXU operands with f32 accumulate -> loose tolerance vs f32 reference.
    assert jnp.allclose(logits, logits_ref, atol=1e-2, rtol=1e-2), "logits mismatch"
    assert jnp.allclose(feats, f_n, atol=1e-2, rtol=1e-2), "features mismatch"

    # normalize=False path (also exercises the no-features-output variant).
    logits_nf = model_wrapper_forward(images, params, normalize=False)
    logits_nf = jax.block_until_ready(logits_nf)
    logits_nf_ref = f_raw @ w_head.T + b_head
    assert jnp.allclose(logits_nf, logits_nf_ref, atol=1e-2, rtol=1e-2), \
        "unnormalized logits mismatch"

    assert logits.shape == (B, num_classes)
    assert feats.shape == (B, feature_dim)
    print("KERNEL_OK")
</pallas_src>

<mosaic_0001>
module attributes {stable_mosaic.version = 11 : i64} {
  func.func @_model_wrapper_kernel(%arg0: i32, %arg1: i32, %arg2: memref<8x1024xf32, #tpu.memory_space<vmem>>, %arg3: memref<1024x128xbf16, #tpu.memory_space<vmem>>, %arg4: memref<1x128xf32, #tpu.memory_space<vmem>>, %arg5: memref<128x128xbf16, #tpu.memory_space<vmem>>, %arg6: memref<1x128xf32, #tpu.memory_space<vmem>>, %arg7: memref<8x128xf32, #tpu.memory_space<vmem>>, %arg8: memref<8x128xf32, #tpu.memory_space<vmem>>, %arg9: memref<8x128xf32, #tpu.memory_space<vmem>>, %arg10: memref<8x128xbf16, #tpu.memory_space<vmem>>) attributes {dimension_semantics = [#tpu.dimension_semantics<parallel>, #tpu.dimension_semantics<arbitrary>], iteration_bounds = array<i64: 1, 1>, scalar_prefetch = 0 : i64, scratch_operands = 2 : i64, tpu.core_type = #tpu.core_type<tc>, window_params = [{transform_indices = @transform_0, window_bounds = array<i64: 8, 1024>}, {transform_indices = @transform_1, window_bounds = array<i64: 1024, 128>}, {pipeline_mode = #tpu.pipeline_mode<synchronous>, transform_indices = @transform_2, window_bounds = array<i64: 1, 128>}, {pipeline_mode = #tpu.pipeline_mode<synchronous>, transform_indices = @transform_3, window_bounds = array<i64: 128, 128>}, {pipeline_mode = #tpu.pipeline_mode<synchronous>, transform_indices = @transform_4, window_bounds = array<i64: 1, 128>}, {transform_indices = @transform_5, window_bounds = array<i64: 8, 128>}, {transform_indices = @transform_6, window_bounds = array<i64: 8, 128>}]} {
    %c0_i32 = arith.constant 0 : i32
    %0 = arith.cmpi eq, %arg1, %c0_i32 : i32
    %1 = arith.extui %0 : i1 to i32
    %c0_i32_0 = arith.constant 0 : i32
    %2 = arith.cmpi ne, %1, %c0_i32_0 : i32
    scf.if %2 {
      %cst = arith.constant 0.000000e+00 : f32
      %12 = vector.broadcast %cst : f32 to vector<8x128xf32>
      %c0 = arith.constant 0 : index
      %c0_6 = arith.constant 0 : index
      %13 = vector.load %arg9[%c0, %c0_6] : memref<8x128xf32, #tpu.memory_space<vmem>>, vector<8x128xf32>
      tpu.vector_store %arg9[%c0, %c0_6], %12 {strides = array<i32>} : memref<8x128xf32, #tpu.memory_space<vmem>>, vector<8x128xf32>,
    } else {
    }
    %c1_i32 = arith.constant 1 : i32
    %3 = arith.cmpi slt, %arg1, %c1_i32 : i32
    %4 = arith.extui %3 : i1 to i32
    %c0_i32_1 = arith.constant 0 : i32
    %5 = arith.cmpi ne, %4, %c0_i32_1 : i32
    scf.if %5 {
      %c0 = arith.constant 0 : index
      %c0_6 = arith.constant 0 : index
      %12 = vector.load %arg9[%c0, %c0_6] : memref<8x128xf32, #tpu.memory_space<vmem>>, vector<8x128xf32>
      %c0_7 = arith.constant 0 : index
      %c0_8 = arith.constant 0 : index
      %13 = vector.load %arg2[%c0_7, %c0_8] : memref<8x1024xf32, #tpu.memory_space<vmem>>, vector<8x1024xf32>
      %14 = arith.truncf %13 : vector<8x1024xf32> to vector<8x1024xbf16>
      %c0_9 = arith.constant 0 : index
      %c0_10 = arith.constant 0 : index
      %15 = vector.load %arg3[%c0_9, %c0_10] : memref<1024x128xbf16, #tpu.memory_space<vmem>>, vector<1024x128xbf16>
      %cst = arith.constant dense<0.000000e+00> : vector<8x128xf32>
      %16 = tpu.matmul %14, %15, %cst {dimension_numbers = #tpu.dot_dimension_numbers<[1], [0], [0], [1], [0, 0, 1, 1], [], []>} : vector<8x1024xbf16>, vector<1024x128xbf16>, vector<8x128xf32> -> vector<8x128xf32>
      %17 = arith.addf %12, %16 : vector<8x128xf32>
      %c0_11 = arith.constant 0 : index
      %c0_12 = arith.constant 0 : index
      %18 = vector.load %arg9[%c0_11, %c0_12] : memref<8x128xf32, #tpu.memory_space<vmem>>, vector<8x128xf32>
      tpu.vector_store %arg9[%c0_11, %c0_12], %17 {strides = array<i32>} : memref<8x128xf32, #tpu.memory_space<vmem>>, vector<8x128xf32>,
    } else {
    }
    %c0_i32_2 = arith.constant 0 : i32
    %6 = arith.cmpi eq, %arg1, %c0_i32_2 : i32
    %7 = arith.extui %6 : i1 to i32
    %c0_i32_3 = arith.constant 0 : i32
    %8 = arith.cmpi ne, %7, %c0_i32_3 : i32
    scf.if %8 {
      %c0 = arith.constant 0 : index
      %c0_6 = arith.constant 0 : index
      %12 = vector.load %arg9[%c0, %c0_6] : memref<8x128xf32, #tpu.memory_space<vmem>>, vector<8x128xf32>
      %c0_7 = arith.constant 0 : index
      %c0_8 = arith.constant 0 : index
      %13 = vector.load %arg4[%c0_7, %c0_8] : memref<1x128xf32, #tpu.memory_space<vmem>>, vector<1x128xf32>
      %14 = vector.broadcast %13 : vector<1x128xf32> to vector<8x128xf32>
      %15 = arith.addf %12, %14 : vector<8x128xf32>
      %c0_9 = arith.constant 0 : index
      %c0_10 = arith.constant 0 : index
      %16 = vector.load %arg9[%c0_9, %c0_10] : memref<8x128xf32, #tpu.memory_space<vmem>>, vector<8x128xf32>
      tpu.vector_store %arg9[%c0_9, %c0_10], %15 {strides = array<i32>} : memref<8x128xf32, #tpu.memory_space<vmem>>, vector<8x128xf32>,
      %c0_11 = arith.constant 0 : index
      %c0_12 = arith.constant 0 : index
      %17 = vector.load %arg9[%c0_11, %c0_12] : memref<8x128xf32, #tpu.memory_space<vmem>>, vector<8x128xf32>
      %c0_13 = arith.constant 0 : index
      %c0_14 = arith.constant 0 : index
      %18 = vector.load %arg9[%c0_13, %c0_14] : memref<8x128xf32, #tpu.memory_space<vmem>>, vector<8x128xf32>
      %19 = arith.mulf %17, %18 : vector<8x128xf32>
      %cst = arith.constant dense<0.000000e+00> : vector<8xf32>
      %20 = vector.multi_reduction <add>, %19, %cst [1] : vector<8x128xf32> to vector<8xf32>
      %21 = vector.shape_cast %20 : vector<8xf32> to vector<8x1xf32>
      %cst_15 = arith.constant 1.000000e-24 : f32
      %22 = vector.broadcast %cst_15 : f32 to vector<8x1xf32>
      %23 = arith.maximumf %21, %22 : vector<8x1xf32>
      %24 = math.rsqrt %23 : vector<8x1xf32>
      %c0_16 = arith.constant 0 : index
      %c0_17 = arith.constant 0 : index
      %25 = vector.load %arg9[%c0_16, %c0_17] : memref<8x128xf32, #tpu.memory_space<vmem>>, vector<8x128xf32>
      %26 = vector.broadcast %24 : vector<8x1xf32> to vector<8x128xf32>
      %27 = arith.mulf %25, %26 : vector<8x128xf32>
      %c0_18 = arith.constant 0 : index
      %c0_19 = arith.constant 0 : index
      %28 = vector.load %arg9[%c0_18, %c0_19] : memref<8x128xf32, #tpu.memory_space<vmem>>, vector<8x128xf32>
      tpu.vector_store %arg9[%c0_18, %c0_19], %27 {strides = array<i32>} : memref<8x128xf32, #tpu.memory_space<vmem>>, vector<8x128xf32>,
      %c0_20 = arith.constant 0 : index
      %c0_21 = arith.constant 0 : index
      %29 = vector.load %arg9[%c0_20, %c0_21] : memref<8x128xf32, #tpu.memory_space<vmem>>, vector<8x128xf32>
      %c0_22 = arith.constant 0 : index
      %c0_23 = arith.constant 0 : index
      %30 = vector.load %arg8[%c0_22, %c0_23] : memref<8x128xf32, #tpu.memory_space<vmem>>, vector<8x128xf32>
      tpu.vector_store %arg8[%c0_22, %c0_23], %29 {strides = array<i32>} : memref<8x128xf32, #tpu.memory_space<vmem>>, vector<8x128xf32>,
      %c0_24 = arith.constant 0 : index
      %c0_25 = arith.constant 0 : index
      %31 = vector.load %arg9[%c0_24, %c0_25] : memref<8x128xf32, #tpu.memory_space<vmem>>, vector<8x128xf32>
      %32 = arith.truncf %31 : vector<8x128xf32> to vector<8x128xbf16>
      %c0_26 = arith.constant 0 : index
      %c0_27 = arith.constant 0 : index
      %33 = vector.load %arg10[%c0_26, %c0_27] : memref<8x128xbf16, #tpu.memory_space<vmem>>, vector<8x128xbf16>
      tpu.vector_store %arg10[%c0_26, %c0_27], %32 {strides = array<i32>} : memref<8x128xbf16, #tpu.memory_space<vmem>>, vector<8x128xbf16>,
    } else {
    }
    %c0_i32_4 = arith.constant 0 : i32
    %9 = arith.cmpi sge, %arg1, %c0_i32_4 : i32
    %10 = arith.extui %9 : i1 to i32
    %c0_i32_5 = arith.constant 0 : i32
    %11 = arith.cmpi ne, %10, %c0_i32_5 : i32
    scf.if %11 {
      %c0 = arith.constant 0 : index
      %c0_6 = arith.constant 0 : index
      %12 = vector.load %arg10[%c0, %c0_6] : memref<8x128xbf16, #tpu.memory_space<vmem>>, vector<8x128xbf16>
      %c0_7 = arith.constant 0 : index
      %c0_8 = arith.constant 0 : index
      %13 = vector.load %arg5[%c0_7, %c0_8] : memref<128x128xbf16, #tpu.memory_space<vmem>>, vector<128x128xbf16>
      %cst = arith.constant dense<0.000000e+00> : vector<8x128xf32>
      %14 = tpu.matmul %12, %13, %cst {dimension_numbers = #tpu.dot_dimension_numbers<[1], [0], [0], [1], [0, 0, 1, 1], [], []>} : vector<8x128xbf16>, vector<128x128xbf16>, vector<8x128xf32> -> vector<8x128xf32>
      %c0_9 = arith.constant 0 : index
      %c0_10 = arith.constant 0 : index
      %15 = vector.load %arg6[%c0_9, %c0_10] : memref<1x128xf32, #tpu.memory_space<vmem>>, vector<1x128xf32>
      %16 = vector.broadcast %15 : vector<1x128xf32> to vector<8x128xf32>
      %17 = arith.addf %14, %16 : vector<8x128xf32>
      %c0_11 = arith.constant 0 : index
      %c0_12 = arith.constant 0 : index
      %18 = vector.load %arg7[%c0_11, %c0_12] : memref<8x128xf32, #tpu.memory_space<vmem>>, vector<8x128xf32>
      tpu.vector_store %arg7[%c0_11, %c0_12], %17 {strides = array<i32>} : memref<8x128xf32, #tpu.memory_space<vmem>>, vector<8x128xf32>,
    } else {
    }
    return
  }
  func.func @transform_0(%arg0: i32, %arg1: i32) -> (i32, i32) {
    %c0_i32 = arith.constant 0 : i32
    return %arg0, %arg1 : i32, i32
  }
  func.func @transform_1(%arg0: i32, %arg1: i32) -> (i32, i32) {
    %c0_i32 = arith.constant 0 : i32
    %c0_i32_0 = arith.constant 0 : i32
    return %arg1, %c0_i32 : i32, i32
  }
  func.func @transform_2(%arg0: i32, %arg1: i32) -> (i32, i32) {
    %c0_i32 = arith.constant 0 : i32
    %c0_i32_0 = arith.constant 0 : i32
    %c0_i32_1 = arith.constant 0 : i32
    return %c0_i32, %c0_i32_0 : i32, i32
  }
  func.func @transform_3(%arg0: i32, %arg1: i32) -> (i32, i32) {
    %c0_i32 = arith.constant 0 : i32
    %c0_i32_0 = arith.constant 0 : i32
    %c0_i32_1 = arith.constant 0 : i32
    return %c0_i32, %c0_i32_0 : i32, i32
  }
  func.func @transform_4(%arg0: i32, %arg1: i32) -> (i32, i32) {
    %c0_i32 = arith.constant 0 : i32
    %c0_i32_0 = arith.constant 0 : i32
    %c0_i32_1 = arith.constant 0 : i32
    return %c0_i32, %c0_i32_0 : i32, i32
  }
  func.func @transform_5(%arg0: i32, %arg1: i32) -> (i32, i32) {
    %c0_i32 = arith.constant 0 : i32
    %c0_i32_0 = arith.constant 0 : i32
    return %arg0, %c0_i32 : i32, i32
  }
  func.func @transform_6(%arg0: i32, %arg1: i32) -> (i32, i32) {
    %c0_i32 = arith.constant 0 : i32
    %c0_i32_0 = arith.constant 0 : i32
    return %arg0, %c0_i32 : i32, i32
  }
}

module attributes {stable_mosaic.version = 11 : i64} {
  func.func @_model_wrapper_kernel(%arg0: i32, %arg1: i32, %arg2: memref<8x1024xf32, #tpu.memory_space<vmem>>, %arg3: memref<1024x128xbf16, #tpu.memory_space<vmem>>, %arg4: memref<1x128xf32, #tpu.memory_space<vmem>>, %arg5: memref<128x128xbf16, #tpu.memory_space<vmem>>, %arg6: memref<1x128xf32, #tpu.memory_space<vmem>>, %arg7: memref<8x128xf32, #tpu.memory_space<vmem>>, %arg8: memref<8x128xf32, #tpu.memory_space<vmem>>, %arg9: memref<8x128xf32, #tpu.memory_space<vmem>>, %arg10: memref<8x128xbf16, #tpu.memory_space<vmem>>) attributes {dimension_semantics = [#tpu.dimension_semantics<parallel>, #tpu.dimension_semantics<arbitrary>], iteration_bounds = array<i64: 1, 1>, scalar_prefetch = 0 : i64, scratch_operands = 2 : i64, tpu.core_type = #tpu.core_type<tc>, window_params = [{transform_indices = @transform_0, window_bounds = array<i64: 8, 1024>}, {transform_indices = @transform_1, window_bounds = array<i64: 1024, 128>}, {pipeline_mode = #tpu.pipeline_mode<synchronous>, transform_indices = @transform_2, window_bounds = array<i64: 1, 128>}, {pipeline_mode = #tpu.pipeline_mode<synchronous>, transform_indices = @transform_3, window_bounds = array<i64: 128, 128>}, {pipeline_mode = #tpu.pipeline_mode<synchronous>, transform_indices = @transform_4, window_bounds = array<i64: 1, 128>}, {transform_indices = @transform_5, window_bounds = array<i64: 8, 128>}, {transform_indices = @transform_6, window_bounds = array<i64: 8, 128>}]} {
    %c0_i32 = arith.constant 0 : i32
    %0 = arith.cmpi eq, %arg1, %c0_i32 : i32
    %1 = arith.extui %0 : i1 to i32
    %c0_i32_0 = arith.constant 0 : i32
    %2 = arith.cmpi ne, %1, %c0_i32_0 : i32
    scf.if %2 {
      %cst = arith.constant 0.000000e+00 : f32
      %12 = vector.broadcast %cst : f32 to vector<8x128xf32>
      %c0 = arith.constant 0 : index
      %c0_6 = arith.constant 0 : index
      %13 = vector.load %arg9[%c0, %c0_6] : memref<8x128xf32, #tpu.memory_space<vmem>>, vector<8x128xf32>
      tpu.vector_store %arg9[%c0, %c0_6], %12 {strides = array<i32>} : memref<8x128xf32, #tpu.memory_space<vmem>>, vector<8x128xf32>,
    } else {
    }
    %c1_i32 = arith.constant 1 : i32
    %3 = arith.cmpi slt, %arg1, %c1_i32 : i32
    %4 = arith.extui %3 : i1 to i32
    %c0_i32_1 = arith.constant 0 : i32
    %5 = arith.cmpi ne, %4, %c0_i32_1 : i32
    scf.if %5 {
      %c0 = arith.constant 0 : index
      %c0_6 = arith.constant 0 : index
      %12 = vector.load %arg9[%c0, %c0_6] : memref<8x128xf32, #tpu.memory_space<vmem>>, vector<8x128xf32>
      %c0_7 = arith.constant 0 : index
      %c0_8 = arith.constant 0 : index
      %13 = vector.load %arg2[%c0_7, %c0_8] : memref<8x1024xf32, #tpu.memory_space<vmem>>, vector<8x1024xf32>
      %14 = arith.truncf %13 : vector<8x1024xf32> to vector<8x1024xbf16>
      %c0_9 = arith.constant 0 : index
      %c0_10 = arith.constant 0 : index
      %15 = vector.load %arg3[%c0_9, %c0_10] : memref<1024x128xbf16, #tpu.memory_space<vmem>>, vector<1024x128xbf16>
      %cst = arith.constant dense<0.000000e+00> : vector<8x128xf32>
      %16 = tpu.matmul %14, %15, %cst {dimension_numbers = #tpu.dot_dimension_numbers<[1], [0], [0], [1], [0, 0, 1, 1], [], []>} : vector<8x1024xbf16>, vector<1024x128xbf16>, vector<8x128xf32> -> vector<8x128xf32>
      %17 = arith.addf %12, %16 : vector<8x128xf32>
      %c0_11 = arith.constant 0 : index
      %c0_12 = arith.constant 0 : index
      %18 = vector.load %arg9[%c0_11, %c0_12] : memref<8x128xf32, #tpu.memory_space<vmem>>, vector<8x128xf32>
      tpu.vector_store %arg9[%c0_11, %c0_12], %17 {strides = array<i32>} : memref<8x128xf32, #tpu.memory_space<vmem>>, vector<8x128xf32>,
    } else {
    }
    %c0_i32_2 = arith.constant 0 : i32
    %6 = arith.cmpi eq, %arg1, %c0_i32_2 : i32
    %7 = arith.extui %6 : i1 to i32
    %c0_i32_3 = arith.constant 0 : i32
    %8 = arith.cmpi ne, %7, %c0_i32_3 : i32
    scf.if %8 {
      %c0 = arith.constant 0 : index
      %c0_6 = arith.constant 0 : index
      %12 = vector.load %arg9[%c0, %c0_6] : memref<8x128xf32, #tpu.memory_space<vmem>>, vector<8x128xf32>
      %c0_7 = arith.constant 0 : index
      %c0_8 = arith.constant 0 : index
      %13 = vector.load %arg4[%c0_7, %c0_8] : memref<1x128xf32, #tpu.memory_space<vmem>>, vector<1x128xf32>
      %14 = vector.broadcast %13 : vector<1x128xf32> to vector<8x128xf32>
      %15 = arith.addf %12, %14 : vector<8x128xf32>
      %c0_9 = arith.constant 0 : index
      %c0_10 = arith.constant 0 : index
      %16 = vector.load %arg9[%c0_9, %c0_10] : memref<8x128xf32, #tpu.memory_space<vmem>>, vector<8x128xf32>
      tpu.vector_store %arg9[%c0_9, %c0_10], %15 {strides = array<i32>} : memref<8x128xf32, #tpu.memory_space<vmem>>, vector<8x128xf32>,
      %c0_11 = arith.constant 0 : index
      %c0_12 = arith.constant 0 : index
      %17 = vector.load %arg9[%c0_11, %c0_12] : memref<8x128xf32, #tpu.memory_space<vmem>>, vector<8x128xf32>
      %c0_13 = arith.constant 0 : index
      %c0_14 = arith.constant 0 : index
      %18 = vector.load %arg9[%c0_13, %c0_14] : memref<8x128xf32, #tpu.memory_space<vmem>>, vector<8x128xf32>
      %19 = arith.mulf %17, %18 : vector<8x128xf32>
      %cst = arith.constant dense<0.000000e+00> : vector<8xf32>
      %20 = vector.multi_reduction <add>, %19, %cst [1] : vector<8x128xf32> to vector<8xf32>
      %21 = vector.shape_cast %20 : vector<8xf32> to vector<8x1xf32>
      %cst_15 = arith.constant 1.000000e-24 : f32
      %22 = vector.broadcast %cst_15 : f32 to vector<8x1xf32>
      %23 = arith.maximumf %21, %22 : vector<8x1xf32>
      %24 = math.rsqrt %23 : vector<8x1xf32>
      %c0_16 = arith.constant 0 : index
      %c0_17 = arith.constant 0 : index
      %25 = vector.load %arg9[%c0_16, %c0_17] : memref<8x128xf32, #tpu.memory_space<vmem>>, vector<8x128xf32>
      %26 = vector.broadcast %24 : vector<8x1xf32> to vector<8x128xf32>
      %27 = arith.mulf %25, %26 : vector<8x128xf32>
      %c0_18 = arith.constant 0 : index
      %c0_19 = arith.constant 0 : index
      %28 = vector.load %arg9[%c0_18, %c0_19] : memref<8x128xf32, #tpu.memory_space<vmem>>, vector<8x128xf32>
      tpu.vector_store %arg9[%c0_18, %c0_19], %27 {strides = array<i32>} : memref<8x128xf32, #tpu.memory_space<vmem>>, vector<8x128xf32>,
      %c0_20 = arith.constant 0 : index
      %c0_21 = arith.constant 0 : index
      %29 = vector.load %arg9[%c0_20, %c0_21] : memref<8x128xf32, #tpu.memory_space<vmem>>, vector<8x128xf32>
      %c0_22 = arith.constant 0 : index
      %c0_23 = arith.constant 0 : index
      %30 = vector.load %arg8[%c0_22, %c0_23] : memref<8x128xf32, #tpu.memory_space<vmem>>, vector<8x128xf32>
      tpu.vector_store %arg8[%c0_22, %c0_23], %29 {strides = array<i32>} : memref<8x128xf32, #tpu.memory_space<vmem>>, vector<8x128xf32>,
      %c0_24 = arith.constant 0 : index
      %c0_25 = arith.constant 0 : index
      %31 = vector.load %arg9[%c0_24, %c0_25] : memref<8x128xf32, #tpu.memory_space<vmem>>, vector<8x128xf32>
      %32 = arith.truncf %31 : vector<8x128xf32> to vector<8x128xbf16>
      %c0_26 = arith.constant 0 : index
      %c0_27 = arith.constant 0 : index
      %33 = vector.load %arg10[%c0_26, %c0_27] : memref<8x128xbf16, #tpu.memory_space<vmem>>, vector<8x128xbf16>
      tpu.vector_store %arg10[%c0_26, %c0_27], %32 {strides = array<i32>} : memref<8x128xbf16, #tpu.memory_space<vmem>>, vector<8x128xbf16>,
    } else {
    }
    %c0_i32_4 = arith.constant 0 : i32
    %9 = arith.cmpi sge, %arg1, %c0_i32_4 : i32
    %10 = arith.extui %9 : i1 to i32
    %c0_i32_5 = arith.constant 0 : i32
    %11 = arith.cmpi ne, %10, %c0_i32_5 : i32
    scf.if %11 {
      %c0 = arith.constant 0 : index
      %c0_6 = arith.constant 0 : index
      %12 = vector.load %arg10[%c0, %c0_6] : memref<8x128xbf16, #tpu.memory_space<vmem>>, vector<8x128xbf16>
      %c0_7 = arith.constant 0 : index
      %c0_8 = arith.constant 0 : index
      %13 = vector.load %arg5[%c0_7, %c0_8] : memref<128x128xbf16, #tpu.memory_space<vmem>>, vector<128x128xbf16>
      %cst = arith.constant dense<0.000000e+00> : vector<8x128xf32>
      %14 = tpu.matmul %12, %13, %cst {dimension_numbers = #tpu.dot_dimension_numbers<[1], [0], [0], [1], [0, 0, 1, 1], [], []>} : vector<8x128xbf16>, vector<128x128xbf16>, vector<8x128xf32> -> vector<8x128xf32>
      %c0_9 = arith.constant 0 : index
      %c0_10 = arith.constant 0 : index
      %15 = vector.load %arg6[%c0_9, %c0_10] : memref<1x128xf32, #tpu.memory_space<vmem>>, vector<1x128xf32>
      %16 = vector.broadcast %15 : vector<1x128xf32> to vector<8x128xf32>
      %17 = arith.addf %14, %16 : vector<8x128xf32>
      %c0_11 = arith.constant 0 : index
      %c0_12 = arith.constant 0 : index
      %18 = vector.load %arg7[%c0_11, %c0_12] : memref<8x128xf32, #tpu.memory_space<vmem>>, vector<8x128xf32>
      tpu.vector_store %arg7[%c0_11, %c0_12], %17 {strides = array<i32>} : memref<8x128xf32, #tpu.memory_space<vmem>>, vector<8x128xf32>,
    } else {
    }
    return
  }
  func.func @transform_0(%arg0: i32, %arg1: i32) -> (i32, i32) {
    %c0_i32 = arith.constant 0 : i32
    return %arg0, %arg1 : i32, i32
  }
  func.func @transform_1(%arg0: i32, %arg1: i32) -> (i32, i32) {
    %c0_i32 = arith.constant 0 : i32
    %c0_i32_0 = arith.constant 0 : i32
    return %arg1, %c0_i32 : i32, i32
  }
  func.func @transform_2(%arg0: i32, %arg1: i32) -> (i32, i32) {
    %c0_i32 = arith.constant 0 : i32
    %c0_i32_0 = arith.constant 0 : i32
    %c0_i32_1 = arith.constant 0 : i32
    return %c0_i32, %c0_i32_0 : i32, i32
  }
  func.func @transform_3(%arg0: i32, %arg1: i32) -> (i32, i32) {
    %c0_i32 = arith.constant 0 : i32
    %c0_i32_0 = arith.constant 0 : i32
    %c0_i32_1 = arith.constant 0 : i32
    return %c0_i32, %c0_i32_0 : i32, i32
  }
  func.func @transform_4(%arg0: i32, %arg1: i32) -> (i32, i32) {
    %c0_i32 = arith.constant 0 : i32
    %c0_i32_0 = arith.constant 0 : i32
    %c0_i32_1 = arith.constant 0 : i32
    return %c0_i32, %c0_i32_0 : i32, i32
  }
  func.func @transform_5(%arg0: i32, %arg1: i32) -> (i32, i32) {
    %c0_i32 = arith.constant 0 : i32
    %c0_i32_0 = arith.constant 0 : i32
    return %arg0, %c0_i32 : i32, i32
  }
  func.func @transform_6(%arg0: i32, %arg1: i32) -> (i32, i32) {
    %c0_i32 = arith.constant 0 : i32
    %c0_i32_0 = arith.constant 0 : i32
    return %arg0, %c0_i32 : i32, i32
  }
}

</mosaic_0001>

<llo_original>
// kernel: tpu_custom_call.1
$region0: #{tpu_custom_call.1}
  #allocation0 [shape = 'u32[]', space=smem, size = 0x4, offset = 0x4, fixed_abs, tag = 'smem constant byte address 0x4 - core index']
  #allocation1 [shape = 'u32[144,128]{1,0:T(1,128)}', space=vmem, size = 0x12000, scoped, tag = 'internal scratch']
  #allocation2 [shape = 'f32[8,128]{1,0:T(8,128)}', space=vmem, size = 0x1000, scoped, tag = 'scratch operand']
  #allocation3 [shape = 'bf16[8,128]{1,0:T(8,128)(2,1)}', space=vmem, size = 0x800, scoped, tag = 'scratch operand']
  %s0 = inlined_call_operand.hbm [shape: f32[8,1024], index: 0, kind: input, shape index: {}]
  %s1 = inlined_call_operand.hbm [shape: bf16[1024,128], index: 1, kind: input, shape index: {}]
  %s2 = inlined_call_operand.vmem [shape: f32[1,128], index: 2, kind: input, shape index: {}]
  %s3 = inlined_call_operand.hbm [shape: bf16[128,128], index: 3, kind: input, shape index: {}]
  %s4 = inlined_call_operand.vmem [shape: f32[1,128], index: 4, kind: input, shape index: {}]
  %s5 = inlined_call_operand.hbm [shape: f32[8,128], index: 5, kind: output, shape index: {0}]
  %s6 = inlined_call_operand.hbm [shape: f32[8,128], index: 6, kind: output, shape index: {1}]
  %7 = xla_tuple %s5, %s6
  %s8 = sld [smem:[#allocation0]]
  $region66: #{tpu_custom_call.1} parent=0
    _
  %s10 = ssub.s32 1, %s8
  %s11 = scalar_select 0, %s10, %s8
  $region1: #{tpu_custom_call.1} parent=0
    #allocation4 [shape = 'u8[32768]{0}', space=vmem, size = 0x8000, scoped, tag = 'input window, operand 0, single buffered']
    #allocation5 [shape = 's32[1]{0}', space=sflag, size = 0x4, scoped, tag = 'scoped memory for tpu_custom_call.1']
    #allocation6 [shape = 's32[1]{0}', space=sflag, size = 0x4, scoped, tag = 'scoped memory for tpu_custom_call.1']
    #allocation7 [shape = 'u8[262144]{0}', space=vmem, size = 0x40000, scoped, tag = 'input window, operand 1, single buffered']
    #allocation8 [shape = 's32[1]{0}', space=sflag, size = 0x4, scoped, tag = 'scoped memory for tpu_custom_call.1']
    #allocation9 [shape = 'u8[32768]{0}', space=vmem, size = 0x8000, scoped, tag = 'input window, operand 3, single buffered']
    #allocation10 [shape = 'u8[4096]{0}', space=vmem, size = 0x1000, scoped, tag = 'output window, operand 0, single buffered']
    #allocation11 [shape = 'u8[4096]{0}', space=vmem, size = 0x1000, scoped, tag = 'output window, operand 1, single buffered']
    #allocation12 [shape = 's32[1]{0}', space=sflag, size = 0x4, scoped, tag = 'scoped memory for tpu_custom_call.1']
    %12 = vsyncpa [#allocation5], 0
    %13 = vsyncpa [#allocation8], 0
    %14 = vsyncpa [#allocation6], 0
    %15 = vsyncpa [#allocation12], 0
    // Predicated region
    $region2: #{tpu_custom_call.1} parent=1 // pred_check
      _
    $region3: #{tpu_custom_call.1} parent=1 // pred_check_branch
      %17 = sbr.rel (0) target = $region5
    $region4: #{tpu_custom_call.1} parent=1 // pred_region
      %s19 = ssub.s32 1024, 1024
      %20 = vsyncadd [#allocation5], %s19
      %s22 = sshll.u32 [#allocation4], 4
      %s23 = int_to_ptr.vmem [resolvable:$true] %s22
      %25 = dma.hbm_to_vmem [thread:$0]  %s0, 1024, %s23, [#allocation5]
    $region5: #{tpu_custom_call.1} parent=1 // pred_fallthru
      _
    // Predicated region
    $region6: #{tpu_custom_call.1} parent=1 // pred_check
      _
    $region7: #{tpu_custom_call.1} parent=1 // pred_check_branch
      %27 = sbr.rel (0) target = $region9
    $region8: #{tpu_custom_call.1} parent=1 // pred_region
      %s29 = ssub.s32 8192, 8192
      %30 = vsyncadd [#allocation8], %s29
      %s31 = sshll.u32 [#allocation7], 4
      %s32 = int_to_ptr.vmem [resolvable:$true] %s31
      %37 = dma.hbm_to_vmem [thread:$0]  %s1, 8192, %s32, [#allocation8], 64, 64, 4
    $region9: #{tpu_custom_call.1} parent=1 // pred_fallthru
      _
    // Predicated region
    $region10: #{tpu_custom_call.1} parent=1 // pred_check
      _
    $region11: #{tpu_custom_call.1} parent=1 // pred_check_branch
      %39 = sbr.rel (0) target = $region13
    $region12: #{tpu_custom_call.1} parent=1 // pred_region
      _
    $region13: #{tpu_custom_call.1} parent=1 // pred_fallthru
      _
    // Predicated region
    $region14: #{tpu_custom_call.1} parent=1 // pred_check
      _
    $region15: #{tpu_custom_call.1} parent=1 // pred_check_branch
      %41 = sbr.rel (0) target = $region17
    $region16: #{tpu_custom_call.1} parent=1 // pred_region
      %s43 = ssub.s32 1024, 1024
      %44 = vsyncadd [#allocation8], %s43
      %s45 = sshll.u32 [#allocation9], 4
      %s46 = int_to_ptr.vmem [resolvable:$true] %s45
      %51 = dma.hbm_to_vmem [thread:$0]  %s3, 1024, %s46, [#allocation8], 64, 64, 4
    $region17: #{tpu_custom_call.1} parent=1 // pred_fallthru
      _
    // Predicated region
    $region18: #{tpu_custom_call.1} parent=1 // pred_check
      _
    $region19: #{tpu_custom_call.1} parent=1 // pred_check_branch
      %53 = sbr.rel (0) target = $region21
    $region20: #{tpu_custom_call.1} parent=1 // pred_region
      _
    $region21: #{tpu_custom_call.1} parent=1 // pred_fallthru
      _
    // Predicated region
    $region22: #{tpu_custom_call.1} parent=1 // pred_check
      _
    $region23: #{tpu_custom_call.1} parent=1 // pred_check_branch
      %55 = sbr.rel (0) target = $region25
    $region24: #{tpu_custom_call.1} parent=1 // pred_region
      %56 = dma.done [#allocation5], 1024
    $region25: #{tpu_custom_call.1} parent=1 // pred_fallthru
      _
    // Predicated region
    $region26: #{tpu_custom_call.1} parent=1 // pred_check
      _
    $region27: #{tpu_custom_call.1} parent=1 // pred_check_branch
      %58 = sbr.rel (0) target = $region29
    $region28: #{tpu_custom_call.1} parent=1 // pred_region
      %59 = dma.done [#allocation8], 8192
    $region29: #{tpu_custom_call.1} parent=1 // pred_fallthru
      _
    // Predicated region
    $region30: #{tpu_custom_call.1} parent=1 // pred_check
      _
    $region31: #{tpu_custom_call.1} parent=1 // pred_check_branch
      %61 = sbr.rel (0) target = $region33
    $region32: #{tpu_custom_call.1} parent=1 // pred_region
      %62 = dma.done [#allocation8], 1024
    $region33: #{tpu_custom_call.1} parent=1 // pred_fallthru
      _
    %p64 = scmp.eq.s32.totalorder 0, 0
    // Predicated region
    $region34: #{tpu_custom_call.1} parent=1 // pred_check
      %p65 = pneg %p64
    $region35: #{tpu_custom_call.1} parent=1 // pred_check_branch
      %67 = sbr.rel (%p65) target = $region37
    $region36: #{tpu_custom_call.1} parent=1 // pred_region
      %68 = vst [vmem:[#allocation2] sm:$0xff] 0.0
    $region37: #{tpu_custom_call.1} parent=1 // pred_fallthru
      _
    %p69 = scmp.lt.s32.totalorder 0, 1
    // Predicated region
    $region38: #{tpu_custom_call.1} parent=1 // pred_check
      %p70 = pneg %p69
    $region39: #{tpu_custom_call.1} parent=1 // pred_check_branch
      %72 = sbr.rel (%p70) target = $region41
    $region40: #{tpu_custom_call.1} parent=1 // pred_region
      %v73 = vld [vmem:[#allocation2] sm:$0xff]
      %v74 = vld [vmem:[#allocation4] sm:$0xff]
      %v75 = vld [vmem:[#allocation4 + $0x8] sm:$0xff]
      %v76 = vld [vmem:[#allocation4 + $0x10] sm:$0xff]
      %v77 = vld [vmem:[#allocation4 + $0x18] sm:$0xff]
      %v78 = vld [vmem:[#allocation4 + $0x20] sm:$0xff]
      %v79 = vld [vmem:[#allocation4 + $0x28] sm:$0xff]
      %v80 = vld [vmem:[#allocation4 + $0x30] sm:$0xff]
      %v81 = vld [vmem:[#allocation4 + $0x38] sm:$0xff]
      %v82 = vpack.c.bf16 %v74, %v74
      %v83 = vpack.c.bf16 %v75, %v75
      %v84 = vpack.c.bf16 %v76, %v76
      %v85 = vpack.c.bf16 %v77, %v77
      %v86 = vpack.c.bf16 %v78, %v78
      %v87 = vpack.c.bf16 %v79, %v79
      %v88 = vpack.c.bf16 %v80, %v80
      %v89 = vpack.c.bf16 %v81, %v81
      %v90 = vld [vmem:[#allocation7] sm:$0xf]
      %v91 = vld [vmem:[#allocation7 + $0x4] sm:$0xf]
      %v92 = vld [vmem:[#allocation7 + $0x8] sm:$0xf]
      %v93 = vld [vmem:[#allocation7 + $0xc] sm:$0xf]
      %v94 = vld [vmem:[#allocation7 + $0x10] sm:$0xf]
      %v95 = vld [vmem:[#allocation7 + $0x14] sm:$0xf]
      %v96 = vld [vmem:[#allocation7 + $0x18] sm:$0xf]
      %v97 = vld [vmem:[#allocation7 + $0x1c] sm:$0xf]
      %v98 = vld [vmem:[#allocation7 + $0x20] sm:$0xf]
      %v99 = vld [vmem:[#allocation7 + $0x24] sm:$0xf]
      %v100 = vld [vmem:[#allocation7 + $0x28] sm:$0xf]
      %v101 = vld [vmem:[#allocation7 + $0x2c] sm:$0xf]
      %v102 = vld [vmem:[#allocation7 + $0x30] sm:$0xf]
      %v103 = vld [vmem:[#allocation7 + $0x34] sm:$0xf]
      %v104 = vld [vmem:[#allocation7 + $0x38] sm:$0xf]
      %v105 = vld [vmem:[#allocation7 + $0x3c] sm:$0xf]
      %v106 = vld [vmem:[#allocation7 + $0x40] sm:$0xf]
      %v107 = vld [vmem:[#allocation7 + $0x44] sm:$0xf]
      %v108 = vld [vmem:[#allocation7 + $0x48] sm:$0xf]
      %v109 = vld [vmem:[#allocation7 + $0x4c] sm:$0xf]
      %v110 = vld [vmem:[#allocation7 + $0x50] sm:$0xf]
      %v111 = vld [vmem:[#allocation7 + $0x54] sm:$0xf]
      %v112 = vld [vmem:[#allocation7 + $0x58] sm:$0xf]
      %v113 = vld [vmem:[#allocation7 + $0x5c] sm:$0xf]
      %v114 = vld [vmem:[#allocation7 + $0x60] sm:$0xf]
      %v115 = vld [vmem:[#allocation7 + $0x64] sm:$0xf]
      %v116 = vld [vmem:[#allocation7 + $0x68] sm:$0xf]
      %v117 = vld [vmem:[#allocation7 + $0x6c] sm:$0xf]
      %v118 = vld [vmem:[#allocation7 + $0x70] sm:$0xf]
      %v119 = vld [vmem:[#allocation7 + $0x74] sm:$0xf]
      %v120 = vld [vmem:[#allocation7 + $0x78] sm:$0xf]
      %v121 = vld [vmem:[#allocation7 + $0x7c] sm:$0xf]
      %v122 = vld [vmem:[#allocation7 + $0x80] sm:$0xf]
      %v123 = vld [vmem:[#allocation7 + $0x84] sm:$0xf]
      %v124 = vld [vmem:[#allocation7 + $0x88] sm:$0xf]
      %v125 = vld [vmem:[#allocation7 + $0x8c] sm:$0xf]
      %v126 = vld [vmem:[#allocation7 + $0x90] sm:$0xf]
      %v127 = vld [vmem:[#allocation7 + $0x94] sm:$0xf]
      %v128 = vld [vmem:[#allocation7 + $0x98] sm:$0xf]
      %v129 = vld [vmem:[#allocation7 + $0x9c] sm:$0xf]
      %v130 = vld [vmem:[#allocation7 + $0xa0] sm:$0xf]
      %v131 = vld [vmem:[#allocation7 + $0xa4] sm:$0xf]
      %v132 = vld [vmem:[#allocation7 + $0xa8] sm:$0xf]
      %v133 = vld [vmem:[#allocation7 + $0xac] sm:$0xf]
      %v134 = vld [vmem:[#allocation7 + $0xb0] sm:$0xf]
      %v135 = vld [vmem:[#allocation7 + $0xb4] sm:$0xf]
      %v136 = vld [vmem:[#allocation7 + $0xb8] sm:$0xf]
      %v137 = vld [vmem:[#allocation7 + $0xbc] sm:$0xf]
      %v138 = vld [vmem:[#allocation7 + $0xc0] sm:$0xf]
      %v139 = vld [vmem:[#allocation7 + $0xc4] sm:$0xf]
      %v140 = vld [vmem:[#allocation7 + $0xc8] sm:$0xf]
      %v141 = vld [vmem:[#allocation7 + $0xcc] sm:$0xf]
      %v142 = vld [vmem:[#allocation7 + $0xd0] sm:$0xf]
      %v143 = vld [vmem:[#allocation7 + $0xd4] sm:$0xf]
      %v144 = vld [vmem:[#allocation7 + $0xd8] sm:$0xf]
      %v145 = vld [vmem:[#allocation7 + $0xdc] sm:$0xf]
      %v146 = vld [vmem:[#allocation7 + $0xe0] sm:$0xf]
      %v147 = vld [vmem:[#allocation7 + $0xe4] sm:$0xf]
      %v148 = vld [vmem:[#allocation7 + $0xe8] sm:$0xf]
      %v149 = vld [vmem:[#allocation7 + $0xec] sm:$0xf]
      %v150 = vld [vmem:[#allocation7 + $0xf0] sm:$0xf]
      %v151 = vld [vmem:[#allocation7 + $0xf4] sm:$0xf]
      %v152 = vld [vmem:[#allocation7 + $0xf8] sm:$0xf]
      %v153 = vld [vmem:[#allocation7 + $0xfc] sm:$0xf]
      %v154 = vld [vmem:[#allocation7 + $0x100] sm:$0xf]
      %v155 = vld [vmem:[#allocation7 + $0x104] sm:$0xf]
      %v156 = vld [vmem:[#allocation7 + $0x108] sm:$0xf]
      %v157 = vld [vmem:[#allocation7 + $0x10c] sm:$0xf]
      %v158 = vld [vmem:[#allocation7 + $0x110] sm:$0xf]
      %v159 = vld [vmem:[#allocation7 + $0x114] sm:$0xf]
      %v160 = vld [vmem:[#allocation7 + $0x118] sm:$0xf]
      %v161 = vld [vmem:[#allocation7 + $0x11c] sm:$0xf]
      %v162 = vld [vmem:[#allocation7 + $0x120] sm:$0xf]
      %v163 = vld [vmem:[#allocation7 + $0x124] sm:$0xf]
      %v164 = vld [vmem:[#allocation7 + $0x128] sm:$0xf]
      %v165 = vld [vmem:[#allocation7 + $0x12c] sm:$0xf]
      %v166 = vld [vmem:[#allocation7 + $0x130] sm:$0xf]
      %v167 = vld [vmem:[#allocation7 + $0x134] sm:$0xf]
      %v168 = vld [vmem:[#allocation7 + $0x138] sm:$0xf]
      %v169 = vld [vmem:[#allocation7 + $0x13c] sm:$0xf]
      %v170 = vld [vmem:[#allocation7 + $0x140] sm:$0xf]
      %v171 = vld [vmem:[#allocation7 + $0x144] sm:$0xf]
      %v172 = vld [vmem:[#allocation7 + $0x148] sm:$0xf]
      %v173 = vld [vmem:[#allocation7 + $0x14c] sm:$0xf]
      %v174 = vld [vmem:[#allocation7 + $0x150] sm:$0xf]
      %v175 = vld [vmem:[#allocation7 + $0x154] sm:$0xf]
      %v176 = vld [vmem:[#allocation7 + $0x158] sm:$0xf]
      %v177 = vld [vmem:[#allocation7 + $0x15c] sm:$0xf]
      %v178 = vld [vmem:[#allocation7 + $0x160] sm:$0xf]
      %v179 = vld [vmem:[#allocation7 + $0x164] sm:$0xf]
      %v180 = vld [vmem:[#allocation7 + $0x168] sm:$0xf]
      %v181 = vld [vmem:[#allocation7 + $0x16c] sm:$0xf]
      %v182 = vld [vmem:[#allocation7 + $0x170] sm:$0xf]
      %v183 = vld [vmem:[#allocation7 + $0x174] sm:$0xf]
      %v184 = vld [vmem:[#allocation7 + $0x178] sm:$0xf]
      %v185 = vld [vmem:[#allocation7 + $0x17c] sm:$0xf]
      %v186 = vld [vmem:[#allocation7 + $0x180] sm:$0xf]
      %v187 = vld [vmem:[#allocation7 + $0x184] sm:$0xf]
      %v188 = vld [vmem:[#allocation7 + $0x188] sm:$0xf]
      %v189 = vld [vmem:[#allocation7 + $0x18c] sm:$0xf]
      %v190 = vld [vmem:[#allocation7 + $0x190] sm:$0xf]
      %v191 = vld [vmem:[#allocation7 + $0x194] sm:$0xf]
      %v192 = vld [vmem:[#allocation7 + $0x198] sm:$0xf]
      %v193 = vld [vmem:[#allocation7 + $0x19c] sm:$0xf]
      %v194 = vld [vmem:[#allocation7 + $0x1a0] sm:$0xf]
      %v195 = vld [vmem:[#allocation7 + $0x1a4] sm:$0xf]
      %v196 = vld [vmem:[#allocation7 + $0x1a8] sm:$0xf]
      %v197 = vld [vmem:[#allocation7 + $0x1ac] sm:$0xf]
      %v198 = vld [vmem:[#allocation7 + $0x1b0] sm:$0xf]
      %v199 = vld [vmem:[#allocation7 + $0x1b4] sm:$0xf]
      %v200 = vld [vmem:[#allocation7 + $0x1b8] sm:$0xf]
      %v201 = vld [vmem:[#allocation7 + $0x1bc] sm:$0xf]
      %v202 = vld [vmem:[#allocation7 + $0x1c0] sm:$0xf]
      %v203 = vld [vmem:[#allocation7 + $0x1c4] sm:$0xf]
      %v204 = vld [vmem:[#allocation7 + $0x1c8] sm:$0xf]
      %v205 = vld [vmem:[#allocation7 + $0x1cc] sm:$0xf]
      %v206 = vld [vmem:[#allocation7 + $0x1d0] sm:$0xf]
      %v207 = vld [vmem:[#allocation7 + $0x1d4] sm:$0xf]
      %v208 = vld [vmem:[#allocation7 + $0x1d8] sm:$0xf]
      %v209 = vld [vmem:[#allocation7 + $0x1dc] sm:$0xf]
      %v210 = vld [vmem:[#allocation7 + $0x1e0] sm:$0xf]
      %v211 = vld [vmem:[#allocation7 + $0x1e4] sm:$0xf]
      %v212 = vld [vmem:[#allocation7 + $0x1e8] sm:$0xf]
      %v213 = vld [vmem:[#allocation7 + $0x1ec] sm:$0xf]
      %v214 = vld [vmem:[#allocation7 + $0x1f0] sm:$0xf]
      %v215 = vld [vmem:[#allocation7 + $0x1f4] sm:$0xf]
      %v216 = vld [vmem:[#allocation7 + $0x1f8] sm:$0xf]
      %v217 = vld [vmem:[#allocation7 + $0x1fc] sm:$0xf]
      %v346 = vunpack.c.l.b16 %v90
      %v347 = vunpack.c.l.b16 %v91
      %v348 = vunpack.c.l.b16 %v92
      %v349 = vunpack.c.l.b16 %v93
      %v350 = vunpack.c.l.b16 %v94
      %v351 = vunpack.c.l.b16 %v95
      %v352 = vunpack.c.l.b16 %v96
      %v353 = vunpack.c.l.b16 %v97
      %v354 = vunpack.c.l.b16 %v98
      %v355 = vunpack.c.l.b16 %v99
      %v356 = vunpack.c.l.b16 %v100
      %v357 = vunpack.c.l.b16 %v101
      %v358 = vunpack.c.l.b16 %v102
      %v359 = vunpack.c.l.b16 %v103
      %v360 = vunpack.c.l.b16 %v104
      %v361 = vunpack.c.l.b16 %v105
      %v362 = vunpack.c.l.b16 %v106
      %v363 = vunpack.c.l.b16 %v107
      %v364 = vunpack.c.l.b16 %v108
      %v365 = vunpack.c.l.b16 %v109
      %v366 = vunpack.c.l.b16 %v110
      %v367 = vunpack.c.l.b16 %v111
      %v368 = vunpack.c.l.b16 %v112
      %v369 = vunpack.c.l.b16 %v113
      %v370 = vunpack.c.l.b16 %v114
      %v371 = vunpack.c.l.b16 %v115
      %v372 = vunpack.c.l.b16 %v116
      %v373 = vunpack.c.l.b16 %v117
      %v374 = vunpack.c.l.b16 %v118
      %v375 = vunpack.c.l.b16 %v119
      %v376 = vunpack.c.l.b16 %v120
      %v377 = vunpack.c.l.b16 %v121
      %v378 = vunpack.c.l.b16 %v122
      %v379 = vunpack.c.l.b16 %v123
      %v380 = vunpack.c.l.b16 %v124
      %v381 = vunpack.c.l.b16 %v125
      %v382 = vunpack.c.l.b16 %v126
      %v383 = vunpack.c.l.b16 %v127
      %v384 = vunpack.c.l.b16 %v128
      %v385 = vunpack.c.l.b16 %v129
      %v386 = vunpack.c.l.b16 %v130
      %v387 = vunpack.c.l.b16 %v131
      %v388 = vunpack.c.l.b16 %v132
      %v389 = vunpack.c.l.b16 %v133
      %v390 = vunpack.c.l.b16 %v134
      %v391 = vunpack.c.l.b16 %v135
      %v392 = vunpack.c.l.b16 %v136
      %v393 = vunpack.c.l.b16 %v137
      %v394 = vunpack.c.l.b16 %v138
      %v395 = vunpack.c.l.b16 %v139
      %v396 = vunpack.c.l.b16 %v140
      %v397 = vunpack.c.l.b16 %v141
      %v398 = vunpack.c.l.b16 %v142
      %v399 = vunpack.c.l.b16 %v143
      %v400 = vunpack.c.l.b16 %v144
      %v401 = vunpack.c.l.b16 %v145
      %v402 = vunpack.c.l.b16 %v146
      %v403 = vunpack.c.l.b16 %v147
      %v404 = vunpack.c.l.b16 %v148
      %v405 = vunpack.c.l.b16 %v149
      %v406 = vunpack.c.l.b16 %v150
      %v407 = vunpack.c.l.b16 %v151
      %v408 = vunpack.c.l.b16 %v152
      %v409 = vunpack.c.l.b16 %v153
      %v410 = vunpack.c.l.b16 %v154
      %v411 = vunpack.c.l.b16 %v155
      %v412 = vunpack.c.l.b16 %v156
      %v413 = vunpack.c.l.b16 %v157
      %v414 = vunpack.c.l.b16 %v158
      %v415 = vunpack.c.l.b16 %v159
      %v416 = vunpack.c.l.b16 %v160
      %v417 = vunpack.c.l.b16 %v161
      %v418 = vunpack.c.l.b16 %v162
      %v419 = vunpack.c.l.b16 %v163
      %v420 = vunpack.c.l.b16 %v164
      %v421 = vunpack.c.l.b16 %v165
      %v422 = vunpack.c.l.b16 %v166
      %v423 = vunpack.c.l.b16 %v167
      %v424 = vunpack.c.l.b16 %v168
      %v425 = vunpack.c.l.b16 %v169
      %v426 = vunpack.c.l.b16 %v170
      %v427 = vunpack.c.l.b16 %v171
      %v428 = vunpack.c.l.b16 %v172
      %v429 = vunpack.c.l.b16 %v173
      %v430 = vunpack.c.l.b16 %v174
      %v431 = vunpack.c.l.b16 %v175
      %v432 = vunpack.c.l.b16 %v176
      %v433 = vunpack.c.l.b16 %v177
      %v434 = vunpack.c.l.b16 %v178
      %v435 = vunpack.c.l.b16 %v179
      %v436 = vunpack.c.l.b16 %v180
      %v437 = vunpack.c.l.b16 %v181
      %v438 = vunpack.c.l.b16 %v182
      %v439 = vunpack.c.l.b16 %v183
      %v440 = vunpack.c.l.b16 %v184
      %v441 = vunpack.c.l.b16 %v185
      %v442 = vunpack.c.l.b16 %v186
      %v443 = vunpack.c.l.b16 %v187
      %v444 = vunpack.c.l.b16 %v188
      %v445 = vunpack.c.l.b16 %v189
      %v446 = vunpack.c.l.b16 %v190
      %v447 = vunpack.c.l.b16 %v191
      %v448 = vunpack.c.l.b16 %v192
      %v449 = vunpack.c.l.b16 %v193
      %v450 = vunpack.c.l.b16 %v194
      %v451 = vunpack.c.l.b16 %v195
      %v452 = vunpack.c.l.b16 %v196
      %v453 = vunpack.c.l.b16 %v197
      %v454 = vunpack.c.l.b16 %v198
      %v455 = vunpack.c.l.b16 %v199
      %v456 = vunpack.c.l.b16 %v200
      %v457 = vunpack.c.l.b16 %v201
      %v458 = vunpack.c.l.b16 %v202
      %v459 = vunpack.c.l.b16 %v203
      %v460 = vunpack.c.l.b16 %v204
      %v461 = vunpack.c.l.b16 %v205
      %v462 = vunpack.c.l.b16 %v206
      %v463 = vunpack.c.l.b16 %v207
      %v464 = vunpack.c.l.b16 %v208
      %v465 = vunpack.c.l.b16 %v209
      %v466 = vunpack.c.l.b16 %v210
      %v467 = vunpack.c.l.b16 %v211
      %v468 = vunpack.c.l.b16 %v212
      %v469 = vunpack.c.l.b16 %v213
      %v470 = vunpack.c.l.b16 %v214
      %v471 = vunpack.c.l.b16 %v215
      %v472 = vunpack.c.l.b16 %v216
      %v473 = vunpack.c.l.b16 %v217
      %v474 = vpack.c.b16 %v347, %v346
      %v475 = vpack.c.b16 %v349, %v348
      %v476 = vpack.c.b16 %v351, %v350
      %v477 = vpack.c.b16 %v353, %v352
      %v478 = vpack.c.b16 %v355, %v354
      %v479 = vpack.c.b16 %v357, %v356
      %v480 = vpack.c.b16 %v359, %v358
      %v481 = vpack.c.b16 %v361, %v360
      %v482 = vpack.c.b16 %v363, %v362
      %v483 = vpack.c.b16 %v365, %v364
      %v484 = vpack.c.b16 %v367, %v366
      %v485 = vpack.c.b16 %v369, %v368
      %v486 = vpack.c.b16 %v371, %v370
      %v487 = vpack.c.b16 %v373, %v372
      %v488 = vpack.c.b16 %v375, %v374
      %v489 = vpack.c.b16 %v377, %v376
      %v490 = vpack.c.b16 %v379, %v378
      %v491 = vpack.c.b16 %v381, %v380
      %v492 = vpack.c.b16 %v383, %v382
      %v493 = vpack.c.b16 %v385, %v384
      %v494 = vpack.c.b16 %v387, %v386
      %v495 = vpack.c.b16 %v389, %v388
      %v496 = vpack.c.b16 %v391, %v390
      %v497 = vpack.c.b16 %v393, %v392
      %v498 = vpack.c.b16 %v395, %v394
      %v499 = vpack.c.b16 %v397, %v396
      %v500 = vpack.c.b16 %v399, %v398
      %v501 = vpack.c.b16 %v401, %v400
      %v502 = vpack.c.b16 %v403, %v402
      %v503 = vpack.c.b16 %v405, %v404
      %v504 = vpack.c.b16 %v407, %v406
      %v505 = vpack.c.b16 %v409, %v408
      %v506 = vpack.c.b16 %v411, %v410
      %v507 = vpack.c.b16 %v413, %v412
      %v508 = vpack.c.b16 %v415, %v414
      %v509 = vpack.c.b16 %v417, %v416
      %v510 = vpack.c.b16 %v419, %v418
      %v511 = vpack.c.b16 %v421, %v420
      %v512 = vpack.c.b16 %v423, %v422
      %v513 = vpack.c.b16 %v425, %v424
      %v514 = vpack.c.b16 %v427, %v426
      %v515 = vpack.c.b16 %v429, %v428
      %v516 = vpack.c.b16 %v431, %v430
      %v517 = vpack.c.b16 %v433, %v432
      %v518 = vpack.c.b16 %v435, %v434
      %v519 = vpack.c.b16 %v437, %v436
      %v520 = vpack.c.b16 %v439, %v438
      %v521 = vpack.c.b16 %v441, %v440
      %v522 = vpack.c.b16 %v443, %v442
      %v523 = vpack.c.b16 %v445, %v444
      %v524 = vpack.c.b16 %v447, %v446
      %v525 = vpack.c.b16 %v449, %v448
      %v526 = vpack.c.b16 %v451, %v450
      %v527 = vpack.c.b16 %v453, %v452
      %v528 = vpack.c.b16 %v455, %v454
      %v529 = vpack.c.b16 %v457, %v456
      %v530 = vpack.c.b16 %v459, %v458
      %v531 = vpack.c.b16 %v461, %v460
      %v532 = vpack.c.b16 %v463, %v462
      %v533 = vpack.c.b16 %v465, %v464
      %v534 = vpack.c.b16 %v467, %v466
      %v535 = vpack.c.b16 %v469, %v468
      %v536 = vpack.c.b16 %v471, %v470
      %v537 = vpack.c.b16 %v473, %v472
      %602 = vmatprep.subr.bf16.mxu0 0
      %603 = vmatpush1.bf16.msra.mxu0 %v481
      %604 = vmatprep.subr.bf16.mxu0 0
      %605 = vmatpush1.bf16.msra.mxu0 %v480
      %606 = vmatprep.subr.bf16.mxu0 0
      %607 = vmatpush1.bf16.msra.mxu0 %v479
      %608 = vmatprep.subr.bf16.mxu0 0
      %609 = vmatpush1.bf16.msra.mxu0 %v478
      %610 = vmatprep.subr.bf16.mxu0 0
      %611 = vmatpush1.bf16.msra.mxu0 %v477
      %612 = vmatprep.subr.bf16.mxu0 0
      %613 = vmatpush1.bf16.msra.mxu0 %v476
      %614 = vmatprep.subr.bf16.mxu0 0
      %615 = vmatpush1.bf16.msra.mxu0 %v475
      %616 = vmatprep.subr.bf16.mxu0 0
      %617 = vmatpush1.bf16.msra.mxu0 %v474
      %618 = vmatprep.subr.bf16.mxu0 0
      %619 = vmatpush2.bf16.msra.mxu0 %v489
      %620 = vmatprep.subr.bf16.mxu0 0
      %621 = vmatpush2.bf16.msra.mxu0 %v488
      %622 = vmatprep.subr.bf16.mxu0 0
      %623 = vmatpush2.bf16.msra.mxu0 %v487
      %624 = vmatprep.subr.bf16.mxu0 0
      %625 = vmatpush2.bf16.msra.mxu0 %v486
      %626 = vmatprep.subr.bf16.mxu0 0
      %627 = vmatpush2.bf16.msra.mxu0 %v485
      %628 = vmatprep.subr.bf16.mxu0 0
      %629 = vmatpush2.bf16.msra.mxu0 %v484
      %630 = vmatprep.subr.bf16.mxu0 0
      %631 = vmatpush2.bf16.msra.mxu0 %v483
      %632 = vmatprep.subr.bf16.mxu0 0
      %633 = vmatpush2.bf16.msra.mxu0 %v482
      %634 = vmatprep.mubr.bf16.mxu0 %v83
      %635 = vmatmul.mubr.bf16.gmra.mxu0 %v82
      %v636 = vpop.f32.mrf.mxu0
      %v637 = vadd.f32 0.0, %v636
      %v638 = vpop.f32.mrf.mxu0
      %v639 = vpop.f32.mrf.mxu0
      %v640 = vpop.f32.mrf.mxu0
      %641 = vdwg.mxu0
      %642 = vmatprep.subr.bf16.mxu0 0
      %643 = vmatpush1.bf16.msra.mxu0 %v497
      %644 = vmatprep.subr.bf16.mxu0 0
      %645 = vmatpush1.bf16.msra.mxu0 %v496
      %646 = vmatprep.subr.bf16.mxu0 0
      %647 = vmatpush1.bf16.msra.mxu0 %v495
      %648 = vmatprep.subr.bf16.mxu0 0
      %649 = vmatpush1.bf16.msra.mxu0 %v494
      %650 = vmatprep.subr.bf16.mxu0 0
      %651 = vmatpush1.bf16.msra.mxu0 %v493
      %652 = vmatprep.subr.bf16.mxu0 0
      %653 = vmatpush1.bf16.msra.mxu0 %v492
      %654 = vmatprep.subr.bf16.mxu0 0
      %655 = vmatpush1.bf16.msra.mxu0 %v491
      %656 = vmatprep.subr.bf16.mxu0 0
      %657 = vmatpush1.bf16.msra.mxu0 %v490
      %658 = vmatprep.subr.bf16.mxu0 0
      %659 = vmatpush2.bf16.msra.mxu0 %v505
      %660 = vmatprep.subr.bf16.mxu0 0
      %661 = vmatpush2.bf16.msra.mxu0 %v504
      %662 = vmatprep.subr.bf16.mxu0 0
      %663 = vmatpush2.bf16.msra.mxu0 %v503
      %664 = vmatprep.subr.bf16.mxu0 0
      %665 = vmatpush2.bf16.msra.mxu0 %v502
      %666 = vmatprep.subr.bf16.mxu0 0
      %667 = vmatpush2.bf16.msra.mxu0 %v501
      %668 = vmatprep.subr.bf16.mxu0 0
      %669 = vmatpush2.bf16.msra.mxu0 %v500
      %670 = vmatprep.subr.bf16.mxu0 0
      %671 = vmatpush2.bf16.msra.mxu0 %v499
      %672 = vmatprep.subr.bf16.mxu0 0
      %673 = vmatpush2.bf16.msra.mxu0 %v498
      %674 = vmatprep.mubr.bf16.mxu0 %v85
      %675 = vmatmul.mubr.bf16.gmra.mxu0 %v84
      %v676 = vpop.f32.mrf.mxu0
      %v677 = vadd.f32 %v637, %v676
      %v678 = vpop.f32.mrf.mxu0
      %v679 = vpop.f32.mrf.mxu0
      %v680 = vpop.f32.mrf.mxu0
      %681 = vdwg.mxu0
      %682 = vmatprep.subr.bf16.mxu0 0
      %683 = vmatpush1.bf16.msra.mxu0 %v513
      %684 = vmatprep.subr.bf16.mxu0 0
      %685 = vmatpush1.bf16.msra.mxu0 %v512
      %686 = vmatprep.subr.bf16.mxu0 0
      %687 = vmatpush1.bf16.msra.mxu0 %v511
      %688 = vmatprep.subr.bf16.mxu0 0
      %689 = vmatpush1.bf16.msra.mxu0 %v510
      %690 = vmatprep.subr.bf16.mxu0 0
      %691 = vmatpush1.bf16.msra.mxu0 %v509
      %692 = vmatprep.subr.bf16.mxu0 0
      %693 = vmatpush1.bf16.msra.mxu0 %v508
      %694 = vmatprep.subr.bf16.mxu0 0
      %695 = vmatpush1.bf16.msra.mxu0 %v507
      %696 = vmatprep.subr.bf16.mxu0 0
      %697 = vmatpush1.bf16.msra.mxu0 %v506
      %698 = vmatprep.subr.bf16.mxu0 0
      %699 = vmatpush2.bf16.msra.mxu0 %v521
      %700 = vmatprep.subr.bf16.mxu0 0
      %701 = vmatpush2.bf16.msra.mxu0 %v520
      %702 = vmatprep.subr.bf16.mxu0 0
      %703 = vmatpush2.bf16.msra.mxu0 %v519
      %704 = vmatprep.subr.bf16.mxu0 0
      %705 = vmatpush2.bf16.msra.mxu0 %v518
      %706 = vmatprep.subr.bf16.mxu0 0
      %707 = vmatpush2.bf16.msra.mxu0 %v517
      %708 = vmatprep.subr.bf16.mxu0 0
      %709 = vmatpush2.bf16.msra.mxu0 %v516
      %710 = vmatprep.subr.bf16.mxu0 0
      %711 = vmatpush2.bf16.msra.mxu0 %v515
      %712 = vmatprep.subr.bf16.mxu0 0
      %713 = vmatpush2.bf16.msra.mxu0 %v514
      %714 = vmatprep.mubr.bf16.mxu0 %v87
      %715 = vmatmul.mubr.bf16.gmra.mxu0 %v86
      %v716 = vpop.f32.mrf.mxu0
      %v717 = vadd.f32 %v677, %v716
      %v718 = vpop.f32.mrf.mxu0
      %v719 = vpop.f32.mrf.mxu0
      %v720 = vpop.f32.mrf.mxu0
      %721 = vdwg.mxu0
      %722 = vmatprep.subr.bf16.mxu0 0
      %723 = vmatpush1.bf16.msra.mxu0 %v529
      %724 = vmatprep.subr.bf16.mxu0 0
      %725 = vmatpush1.bf16.msra.mxu0 %v528
      %726 = vmatprep.subr.bf16.mxu0 0
      %727 = vmatpush1.bf16.msra.mxu0 %v527
      %728 = vmatprep.subr.bf16.mxu0 0
      %729 = vmatpush1.bf16.msra.mxu0 %v526
      %730 = vmatprep.subr.bf16.mxu0 0
      %731 = vmatpush1.bf16.msra.mxu0 %v525
      %732 = vmatprep.subr.bf16.mxu0 0
      %733 = vmatpush1.bf16.msra.mxu0 %v524
      %734 = vmatprep.subr.bf16.mxu0 0
      %735 = vmatpush1.bf16.msra.mxu0 %v523
      %736 = vmatprep.subr.bf16.mxu0 0
      %737 = vmatpush1.bf16.msra.mxu0 %v522
      %738 = vmatprep.subr.bf16.mxu0 0
      %739 = vmatpush2.bf16.msra.mxu0 %v537
      %740 = vmatprep.subr.bf16.mxu0 0
      %741 = vmatpush2.bf16.msra.mxu0 %v536
      %742 = vmatprep.subr.bf16.mxu0 0
      %743 = vmatpush2.bf16.msra.mxu0 %v535
      %744 = vmatprep.subr.bf16.mxu0 0
      %745 = vmatpush2.bf16.msra.mxu0 %v534
      %746 = vmatprep.subr.bf16.mxu0 0
      %747 = vmatpush2.bf16.msra.mxu0 %v533
      %748 = vmatprep.subr.bf16.mxu0 0
      %749 = vmatpush2.bf16.msra.mxu0 %v532
      %750 = vmatprep.subr.bf16.mxu0 0
      %751 = vmatpush2.bf16.msra.mxu0 %v531
      %752 = vmatprep.subr.bf16.mxu0 0
      %753 = vmatpush2.bf16.msra.mxu0 %v530
      %754 = vmatprep.mubr.bf16.mxu0 %v89
      %755 = vmatmul.mubr.bf16.gmra.mxu0 %v88
      %v756 = vpop.f32.mrf.mxu0
      %v757 = vadd.f32 %v717, %v756
      %v758 = vpop.f32.mrf.mxu0
      %v759 = vpop.f32.mrf.mxu0
      %v760 = vpop.f32.mrf.mxu0
      %761 = vdwg.mxu0
      %v762 = vadd.f32 %v73, %v757
      %763 = vst [vmem:[#allocation2] sm:$0xff] %v762
    $region41: #{tpu_custom_call.1} parent=1 // pred_fallthru
      _
    // Predicated region
    $region42: #{tpu_custom_call.1} parent=1 // pred_check
      %p764 = pneg %p64
    $region43: #{tpu_custom_call.1} parent=1 // pred_check_branch
      %766 = sbr.rel (%p764) target = $region45
    $region44: #{tpu_custom_call.1} parent=1 // pred_region
      %v767 = vld [vmem:[#allocation2] sm:$0xff]
      %v768 = vld [vmem:[%s2] sm:$0x1]
      %v770 = vlaneseq
      %v771 = vshrl.u32 %v770, 7
      %v772 = vsub.s32 0, %v771
      %v773 = vrot.slane %v768, %v772
      %v775 = vadd.f32 %v767, %v773
      %776 = vst [vmem:[#allocation2] sm:$0xff] %v775
      %v777 = vld [vmem:[#allocation2] sm:$0xff]
      %v778 = vmul.f32 %v777, %v777
      %779 = vadd.xlane.f32.xlu0 %v778
      %v780 = vpop.xlane.xlu0 %779
      %v781 = vmax.f32 %v780, 1e-24
      %v782 = vrsqrt.pop %v781
      %v783 = vmul.f32 %v777, %v782
      %784 = vst [vmem:[#allocation2] sm:$0xff] %v783
      %v785 = vld [vmem:[#allocation2] sm:$0xff]
      %786 = vst [vmem:[#allocation11] sm:$0xff] %v785
      %v787 = vld [vmem:[#allocation2] sm:$0xff]
      %v788 = vpack.c.bf16 %v787, %v787
      %789 = vst [vmem:[#allocation3] sm:$0xf] %v788
    $region45: #{tpu_custom_call.1} parent=1 // pred_fallthru
      _
    %p790 = scmp.ge.s32.totalorder 0, 0
    // Predicated region
    $region46: #{tpu_custom_call.1} parent=1 // pred_check
      %p791 = pneg %p790
    $region47: #{tpu_custom_call.1} parent=1 // pred_check_branch
      %793 = sbr.rel (%p791) target = $region49
    $region48: #{tpu_custom_call.1} parent=1 // pred_region
      %v794 = vld [vmem:[#allocation3] sm:$0xf]
      %v795 = vld [vmem:[#allocation9] sm:$0xf]
      %v796 = vld [vmem:[#allocation9 + $0x4] sm:$0xf]
      %v797 = vld [vmem:[#allocation9 + $0x8] sm:$0xf]
      %v798 = vld [vmem:[#allocation9 + $0xc] sm:$0xf]
      %v799 = vld [vmem:[#allocation9 + $0x10] sm:$0xf]
      %v800 = vld [vmem:[#allocation9 + $0x14] sm:$0xf]
      %v801 = vld [vmem:[#allocation9 + $0x18] sm:$0xf]
      %v802 = vld [vmem:[#allocation9 + $0x1c] sm:$0xf]
      %v803 = vld [vmem:[#allocation9 + $0x20] sm:$0xf]
      %v804 = vld [vmem:[#allocation9 + $0x24] sm:$0xf]
      %v805 = vld [vmem:[#allocation9 + $0x28] sm:$0xf]
      %v806 = vld [vmem:[#allocation9 + $0x2c] sm:$0xf]
      %v807 = vld [vmem:[#allocation9 + $0x30] sm:$0xf]
      %v808 = vld [vmem:[#allocation9 + $0x34] sm:$0xf]
      %v809 = vld [vmem:[#allocation9 + $0x38] sm:$0xf]
      %v810 = vld [vmem:[#allocation9 + $0x3c] sm:$0xf]
      %v811 = vld [vmem:[%s4] sm:$0x1]
      %v813 = vlaneseq
      %v814 = vshrl.u32 %v813, 7
      %v815 = vsub.s32 0, %v814
      %v816 = vrot.slane %v811, %v815
      %v834 = vunpack.c.l.b16 %v795
      %v835 = vunpack.c.l.b16 %v796
      %v836 = vunpack.c.l.b16 %v797
      %v837 = vunpack.c.l.b16 %v798
      %v838 = vunpack.c.l.b16 %v799
      %v839 = vunpack.c.l.b16 %v800
      %v840 = vunpack.c.l.b16 %v801
      %v841 = vunpack.c.l.b16 %v802
      %v842 = vunpack.c.l.b16 %v803
      %v843 = vunpack.c.l.b16 %v804
      %v844 = vunpack.c.l.b16 %v805
      %v845 = vunpack.c.l.b16 %v806
      %v846 = vunpack.c.l.b16 %v807
      %v847 = vunpack.c.l.b16 %v808
      %v848 = vunpack.c.l.b16 %v809
      %v849 = vunpack.c.l.b16 %v810
      %v850 = vpack.c.b16 %v835, %v834
      %v851 = vpack.c.b16 %v837, %v836
      %v852 = vpack.c.b16 %v839, %v838
      %v853 = vpack.c.b16 %v841, %v840
      %v854 = vpack.c.b16 %v843, %v842
      %v855 = vpack.c.b16 %v845, %v844
      %v856 = vpack.c.b16 %v847, %v846
      %v857 = vpack.c.b16 %v849, %v848
      %866 = vmatprep.subr.bf16.mxu0 0
      %867 = vmatpush1.bf16.msra.mxu0 %v857
      %868 = vmatprep.subr.bf16.mxu0 0
      %869 = vmatpush1.bf16.msra.mxu0 %v856
      %870 = vmatprep.subr.bf16.mxu0 0
      %871 = vmatpush1.bf16.msra.mxu0 %v855
      %872 = vmatprep.subr.bf16.mxu0 0
      %873 = vmatpush1.bf16.msra.mxu0 %v854
      %874 = vmatprep.subr.bf16.mxu0 0
      %875 = vmatpush1.bf16.msra.mxu0 %v853
      %876 = vmatprep.subr.bf16.mxu0 0
      %877 = vmatpush1.bf16.msra.mxu0 %v852
      %878 = vmatprep.subr.bf16.mxu0 0
      %879 = vmatpush1.bf16.msra.mxu0 %v851
      %880 = vmatprep.subr.bf16.mxu0 0
      %881 = vmatpush1.bf16.msra.mxu0 %v850
      %882 = vmatprep.subr.bf16.mxu0 0
      %883 = vmatpush2.bf16.msra.mxu0 0
      %884 = vmatprep.subr.bf16.mxu0 0
      %885 = vmatpush2.bf16.msra.mxu0 0
      %886 = vmatprep.subr.bf16.mxu0 0
      %887 = vmatpush2.bf16.msra.mxu0 0
      %888 = vmatprep.subr.bf16.mxu0 0
      %889 = vmatpush2.bf16.msra.mxu0 0
      %890 = vmatprep.subr.bf16.mxu0 0
      %891 = vmatpush2.bf16.msra.mxu0 0
      %892 = vmatprep.subr.bf16.mxu0 0
      %893 = vmatpush2.bf16.msra.mxu0 0
      %894 = vmatprep.subr.bf16.mxu0 0
      %895 = vmatpush2.bf16.msra.mxu0 0
      %896 = vmatprep.subr.bf16.mxu0 0
      %897 = vmatpush2.bf16.msra.mxu0 0
      %898 = vmatprep.mubr.bf16.mxu0 0
      %899 = vmatmul.mubr.bf16.gmra.mxu0 %v794
      %v900 = vpop.f32.mrf.mxu0
      %v901 = vadd.f32 %v816, %v900
      %v902 = vpop.f32.mrf.mxu0
      %v903 = vpop.f32.mrf.mxu0
      %v904 = vpop.f32.mrf.mxu0
      %905 = vdwg.mxu0
      %906 = vst [vmem:[#allocation10] sm:$0xff] %v901
    $region49: #{tpu_custom_call.1} parent=1 // pred_fallthru
      _
    // Predicated region
    $region50: #{tpu_custom_call.1} parent=1 // pred_check
      _
    $region51: #{tpu_custom_call.1} parent=1 // pred_check_branch
      %908 = sbr.rel (0) target = $region53
    $region52: #{tpu_custom_call.1} parent=1 // pred_region
      %s910 = ssub.s32 128, 128
      %911 = vsyncadd [#allocation6], %s910
      %s913 = sshll.u32 [#allocation10], 4
      %s914 = int_to_ptr.vmem [resolvable:$true] %s913
      %916 = dma.vmem_to_hbm [thread:$0]  %s914, 128, %s5, [#allocation6]
    $region53: #{tpu_custom_call.1} parent=1 // pred_fallthru
      _
    // Predicated region
    $region54: #{tpu_custom_call.1} parent=1 // pred_check
      _
    $region55: #{tpu_custom_call.1} parent=1 // pred_check_branch
      %918 = sbr.rel (0) target = $region57
    $region56: #{tpu_custom_call.1} parent=1 // pred_region
      %s920 = ssub.s32 128, 128
      %921 = vsyncadd [#allocation12], %s920
      %s923 = sshll.u32 [#allocation11], 4
      %s924 = int_to_ptr.vmem [resolvable:$true] %s923
      %926 = dma.vmem_to_hbm [thread:$0]  %s924, 128, %s6, [#allocation12]
    $region57: #{tpu_custom_call.1} parent=1 // pred_fallthru
      _
    // Predicated region
    $region58: #{tpu_custom_call.1} parent=1 // pred_check
      _
    $region59: #{tpu_custom_call.1} parent=1 // pred_check_branch
      %928 = sbr.rel (0) target = $region61
    $region60: #{tpu_custom_call.1} parent=1 // pred_region
      %929 = dma.done [#allocation6], 128
    $region61: #{tpu_custom_call.1} parent=1 // pred_fallthru
      _
    // Predicated region
    $region62: #{tpu_custom_call.1} parent=1 // pred_check
      _
    $region63: #{tpu_custom_call.1} parent=1 // pred_check_branch
      %931 = sbr.rel (0) target = $region65
    $region64: #{tpu_custom_call.1} parent=1 // pred_region
      %932 = dma.done [#allocation12], 128
    $region65: #{tpu_custom_call.1} parent=1 // pred_fallthru
      _
    %933 = vsyncpa [#allocation5], 1
    %934 = vsyncpa [#allocation8], 1
    %935 = vsyncpa [#allocation6], 1
    %936 = vsyncpa [#allocation12], 1

// kernel: tpu_custom_call.1
$region0: #{tpu_custom_call.1}
  #allocation0 [shape = 'u32[]', space=smem, size = 0x4, offset = 0x4, fixed_abs, tag = 'smem constant byte address 0x4 - core index']
  #allocation1 [shape = 'u32[144,128]{1,0:T(1,128)}', space=vmem, size = 0x12000, scoped, tag = 'internal scratch']
  #allocation2 [shape = 'f32[8,128]{1,0:T(8,128)}', space=vmem, size = 0x1000, scoped, tag = 'scratch operand']
  #allocation3 [shape = 'bf16[8,128]{1,0:T(8,128)(2,1)}', space=vmem, size = 0x800, scoped, tag = 'scratch operand']
  %s0 = inlined_call_operand.hbm [shape: f32[8,1024], index: 0, kind: input, shape index: {}]
  %s1 = inlined_call_operand.hbm [shape: bf16[1024,128], index: 1, kind: input, shape index: {}]
  %s2 = inlined_call_operand.vmem [shape: f32[1,128], index: 2, kind: input, shape index: {}]
  %s3 = inlined_call_operand.hbm [shape: bf16[128,128], index: 3, kind: input, shape index: {}]
  %s4 = inlined_call_operand.vmem [shape: f32[1,128], index: 4, kind: input, shape index: {}]
  %s5 = inlined_call_operand.hbm [shape: f32[8,128], index: 5, kind: output, shape index: {0}]
  %s6 = inlined_call_operand.hbm [shape: f32[8,128], index: 6, kind: output, shape index: {1}]
  %7 = xla_tuple %s5, %s6
  %s8 = sld [smem:[#allocation0]]
  $region66: #{tpu_custom_call.1} parent=0
    _
  %s10 = ssub.s32 1, %s8
  %s11 = scalar_select 0, %s10, %s8
  $region1: #{tpu_custom_call.1} parent=0
    #allocation4 [shape = 'u8[32768]{0}', space=vmem, size = 0x8000, scoped, tag = 'input window, operand 0, single buffered']
    #allocation5 [shape = 's32[1]{0}', space=sflag, size = 0x4, scoped, tag = 'scoped memory for tpu_custom_call.1']
    #allocation6 [shape = 's32[1]{0}', space=sflag, size = 0x4, scoped, tag = 'scoped memory for tpu_custom_call.1']
    #allocation7 [shape = 'u8[262144]{0}', space=vmem, size = 0x40000, scoped, tag = 'input window, operand 1, single buffered']
    #allocation8 [shape = 's32[1]{0}', space=sflag, size = 0x4, scoped, tag = 'scoped memory for tpu_custom_call.1']
    #allocation9 [shape = 'u8[32768]{0}', space=vmem, size = 0x8000, scoped, tag = 'input window, operand 3, single buffered']
    #allocation10 [shape = 'u8[4096]{0}', space=vmem, size = 0x1000, scoped, tag = 'output window, operand 0, single buffered']
    #allocation11 [shape = 'u8[4096]{0}', space=vmem, size = 0x1000, scoped, tag = 'output window, operand 1, single buffered']
    #allocation12 [shape = 's32[1]{0}', space=sflag, size = 0x4, scoped, tag = 'scoped memory for tpu_custom_call.1']
    %12 = vsyncpa [#allocation5], 0
    %13 = vsyncpa [#allocation8], 0
    %14 = vsyncpa [#allocation6], 0
    %15 = vsyncpa [#allocation12], 0
    // Predicated region
    $region2: #{tpu_custom_call.1} parent=1 // pred_check
      _
    $region3: #{tpu_custom_call.1} parent=1 // pred_check_branch
      %17 = sbr.rel (0) target = $region5
    $region4: #{tpu_custom_call.1} parent=1 // pred_region
      %s19 = ssub.s32 1024, 1024
      %20 = vsyncadd [#allocation5], %s19
      %s22 = sshll.u32 [#allocation4], 4
      %s23 = int_to_ptr.vmem [resolvable:$true] %s22
      %25 = dma.hbm_to_vmem [thread:$0]  %s0, 1024, %s23, [#allocation5]
    $region5: #{tpu_custom_call.1} parent=1 // pred_fallthru
      _
    // Predicated region
    $region6: #{tpu_custom_call.1} parent=1 // pred_check
      _
    $region7: #{tpu_custom_call.1} parent=1 // pred_check_branch
      %27 = sbr.rel (0) target = $region9
    $region8: #{tpu_custom_call.1} parent=1 // pred_region
      %s29 = ssub.s32 8192, 8192
      %30 = vsyncadd [#allocation8], %s29
      %s31 = sshll.u32 [#allocation7], 4
      %s32 = int_to_ptr.vmem [resolvable:$true] %s31
      %37 = dma.hbm_to_vmem [thread:$0]  %s1, 8192, %s32, [#allocation8], 64, 64, 4
    $region9: #{tpu_custom_call.1} parent=1 // pred_fallthru
      _
    // Predicated region
    $region10: #{tpu_custom_call.1} parent=1 // pred_check
      _
    $region11: #{tpu_custom_call.1} parent=1 // pred_check_branch
      %39 = sbr.rel (0) target = $region13
    $region12: #{tpu_custom_call.1} parent=1 // pred_region
      _
    $region13: #{tpu_custom_call.1} parent=1 // pred_fallthru
      _
    // Predicated region
    $region14: #{tpu_custom_call.1} parent=1 // pred_check
      _
    $region15: #{tpu_custom_call.1} parent=1 // pred_check_branch
      %41 = sbr.rel (0) target = $region17
    $region16: #{tpu_custom_call.1} parent=1 // pred_region
      %s43 = ssub.s32 1024, 1024
      %44 = vsyncadd [#allocation8], %s43
      %s45 = sshll.u32 [#allocation9], 4
      %s46 = int_to_ptr.vmem [resolvable:$true] %s45
      %51 = dma.hbm_to_vmem [thread:$0]  %s3, 1024, %s46, [#allocation8], 64, 64, 4
    $region17: #{tpu_custom_call.1} parent=1 // pred_fallthru
      _
    // Predicated region
    $region18: #{tpu_custom_call.1} parent=1 // pred_check
      _
    $region19: #{tpu_custom_call.1} parent=1 // pred_check_branch
      %53 = sbr.rel (0) target = $region21
    $region20: #{tpu_custom_call.1} parent=1 // pred_region
      _
    $region21: #{tpu_custom_call.1} parent=1 // pred_fallthru
      _
    // Predicated region
    $region22: #{tpu_custom_call.1} parent=1 // pred_check
      _
    $region23: #{tpu_custom_call.1} parent=1 // pred_check_branch
      %55 = sbr.rel (0) target = $region25
    $region24: #{tpu_custom_call.1} parent=1 // pred_region
      %56 = dma.done [#allocation5], 1024
    $region25: #{tpu_custom_call.1} parent=1 // pred_fallthru
      _
    // Predicated region
    $region26: #{tpu_custom_call.1} parent=1 // pred_check
      _
    $region27: #{tpu_custom_call.1} parent=1 // pred_check_branch
      %58 = sbr.rel (0) target = $region29
    $region28: #{tpu_custom_call.1} parent=1 // pred_region
      %59 = dma.done [#allocation8], 8192
    $region29: #{tpu_custom_call.1} parent=1 // pred_fallthru
      _
    // Predicated region
    $region30: #{tpu_custom_call.1} parent=1 // pred_check
      _
    $region31: #{tpu_custom_call.1} parent=1 // pred_check_branch
      %61 = sbr.rel (0) target = $region33
    $region32: #{tpu_custom_call.1} parent=1 // pred_region
      %62 = dma.done [#allocation8], 1024
    $region33: #{tpu_custom_call.1} parent=1 // pred_fallthru
      _
    %p64 = scmp.eq.s32.totalorder 0, 0
    // Predicated region
    $region34: #{tpu_custom_call.1} parent=1 // pred_check
      %p65 = pneg %p64
    $region35: #{tpu_custom_call.1} parent=1 // pred_check_branch
      %67 = sbr.rel (%p65) target = $region37
    $region36: #{tpu_custom_call.1} parent=1 // pred_region
      %68 = vst [vmem:[#allocation2] sm:$0xff] 0.0
    $region37: #{tpu_custom_call.1} parent=1 // pred_fallthru
      _
    %p69 = scmp.lt.s32.totalorder 0, 1
    // Predicated region
    $region38: #{tpu_custom_call.1} parent=1 // pred_check
      %p70 = pneg %p69
    $region39: #{tpu_custom_call.1} parent=1 // pred_check_branch
      %72 = sbr.rel (%p70) target = $region41
    $region40: #{tpu_custom_call.1} parent=1 // pred_region
      %v73 = vld [vmem:[#allocation2] sm:$0xff]
      %v74 = vld [vmem:[#allocation4] sm:$0xff]
      %v75 = vld [vmem:[#allocation4 + $0x8] sm:$0xff]
      %v76 = vld [vmem:[#allocation4 + $0x10] sm:$0xff]
      %v77 = vld [vmem:[#allocation4 + $0x18] sm:$0xff]
      %v78 = vld [vmem:[#allocation4 + $0x20] sm:$0xff]
      %v79 = vld [vmem:[#allocation4 + $0x28] sm:$0xff]
      %v80 = vld [vmem:[#allocation4 + $0x30] sm:$0xff]
      %v81 = vld [vmem:[#allocation4 + $0x38] sm:$0xff]
      %v82 = vpack.c.bf16 %v74, %v74
      %v83 = vpack.c.bf16 %v75, %v75
      %v84 = vpack.c.bf16 %v76, %v76
      %v85 = vpack.c.bf16 %v77, %v77
      %v86 = vpack.c.bf16 %v78, %v78
      %v87 = vpack.c.bf16 %v79, %v79
      %v88 = vpack.c.bf16 %v80, %v80
      %v89 = vpack.c.bf16 %v81, %v81
      %v90 = vld [vmem:[#allocation7] sm:$0xf]
      %v91 = vld [vmem:[#allocation7 + $0x4] sm:$0xf]
      %v92 = vld [vmem:[#allocation7 + $0x8] sm:$0xf]
      %v93 = vld [vmem:[#allocation7 + $0xc] sm:$0xf]
      %v94 = vld [vmem:[#allocation7 + $0x10] sm:$0xf]
      %v95 = vld [vmem:[#allocation7 + $0x14] sm:$0xf]
      %v96 = vld [vmem:[#allocation7 + $0x18] sm:$0xf]
      %v97 = vld [vmem:[#allocation7 + $0x1c] sm:$0xf]
      %v98 = vld [vmem:[#allocation7 + $0x20] sm:$0xf]
      %v99 = vld [vmem:[#allocation7 + $0x24] sm:$0xf]
      %v100 = vld [vmem:[#allocation7 + $0x28] sm:$0xf]
      %v101 = vld [vmem:[#allocation7 + $0x2c] sm:$0xf]
      %v102 = vld [vmem:[#allocation7 + $0x30] sm:$0xf]
      %v103 = vld [vmem:[#allocation7 + $0x34] sm:$0xf]
      %v104 = vld [vmem:[#allocation7 + $0x38] sm:$0xf]
      %v105 = vld [vmem:[#allocation7 + $0x3c] sm:$0xf]
      %v106 = vld [vmem:[#allocation7 + $0x40] sm:$0xf]
      %v107 = vld [vmem:[#allocation7 + $0x44] sm:$0xf]
      %v108 = vld [vmem:[#allocation7 + $0x48] sm:$0xf]
      %v109 = vld [vmem:[#allocation7 + $0x4c] sm:$0xf]
      %v110 = vld [vmem:[#allocation7 + $0x50] sm:$0xf]
      %v111 = vld [vmem:[#allocation7 + $0x54] sm:$0xf]
      %v112 = vld [vmem:[#allocation7 + $0x58] sm:$0xf]
      %v113 = vld [vmem:[#allocation7 + $0x5c] sm:$0xf]
      %v114 = vld [vmem:[#allocation7 + $0x60] sm:$0xf]
      %v115 = vld [vmem:[#allocation7 + $0x64] sm:$0xf]
      %v116 = vld [vmem:[#allocation7 + $0x68] sm:$0xf]
      %v117 = vld [vmem:[#allocation7 + $0x6c] sm:$0xf]
      %v118 = vld [vmem:[#allocation7 + $0x70] sm:$0xf]
      %v119 = vld [vmem:[#allocation7 + $0x74] sm:$0xf]
      %v120 = vld [vmem:[#allocation7 + $0x78] sm:$0xf]
      %v121 = vld [vmem:[#allocation7 + $0x7c] sm:$0xf]
      %v122 = vld [vmem:[#allocation7 + $0x80] sm:$0xf]
      %v123 = vld [vmem:[#allocation7 + $0x84] sm:$0xf]
      %v124 = vld [vmem:[#allocation7 + $0x88] sm:$0xf]
      %v125 = vld [vmem:[#allocation7 + $0x8c] sm:$0xf]
      %v126 = vld [vmem:[#allocation7 + $0x90] sm:$0xf]
      %v127 = vld [vmem:[#allocation7 + $0x94] sm:$0xf]
      %v128 = vld [vmem:[#allocation7 + $0x98] sm:$0xf]
      %v129 = vld [vmem:[#allocation7 + $0x9c] sm:$0xf]
      %v130 = vld [vmem:[#allocation7 + $0xa0] sm:$0xf]
      %v131 = vld [vmem:[#allocation7 + $0xa4] sm:$0xf]
      %v132 = vld [vmem:[#allocation7 + $0xa8] sm:$0xf]
      %v133 = vld [vmem:[#allocation7 + $0xac] sm:$0xf]
      %v134 = vld [vmem:[#allocation7 + $0xb0] sm:$0xf]
      %v135 = vld [vmem:[#allocation7 + $0xb4] sm:$0xf]
      %v136 = vld [vmem:[#allocation7 + $0xb8] sm:$0xf]
      %v137 = vld [vmem:[#allocation7 + $0xbc] sm:$0xf]
      %v138 = vld [vmem:[#allocation7 + $0xc0] sm:$0xf]
      %v139 = vld [vmem:[#allocation7 + $0xc4] sm:$0xf]
      %v140 = vld [vmem:[#allocation7 + $0xc8] sm:$0xf]
      %v141 = vld [vmem:[#allocation7 + $0xcc] sm:$0xf]
      %v142 = vld [vmem:[#allocation7 + $0xd0] sm:$0xf]
      %v143 = vld [vmem:[#allocation7 + $0xd4] sm:$0xf]
      %v144 = vld [vmem:[#allocation7 + $0xd8] sm:$0xf]
      %v145 = vld [vmem:[#allocation7 + $0xdc] sm:$0xf]
      %v146 = vld [vmem:[#allocation7 + $0xe0] sm:$0xf]
      %v147 = vld [vmem:[#allocation7 + $0xe4] sm:$0xf]
      %v148 = vld [vmem:[#allocation7 + $0xe8] sm:$0xf]
      %v149 = vld [vmem:[#allocation7 + $0xec] sm:$0xf]
      %v150 = vld [vmem:[#allocation7 + $0xf0] sm:$0xf]
      %v151 = vld [vmem:[#allocation7 + $0xf4] sm:$0xf]
      %v152 = vld [vmem:[#allocation7 + $0xf8] sm:$0xf]
      %v153 = vld [vmem:[#allocation7 + $0xfc] sm:$0xf]
      %v154 = vld [vmem:[#allocation7 + $0x100] sm:$0xf]
      %v155 = vld [vmem:[#allocation7 + $0x104] sm:$0xf]
      %v156 = vld [vmem:[#allocation7 + $0x108] sm:$0xf]
      %v157 = vld [vmem:[#allocation7 + $0x10c] sm:$0xf]
      %v158 = vld [vmem:[#allocation7 + $0x110] sm:$0xf]
      %v159 = vld [vmem:[#allocation7 + $0x114] sm:$0xf]
      %v160 = vld [vmem:[#allocation7 + $0x118] sm:$0xf]
      %v161 = vld [vmem:[#allocation7 + $0x11c] sm:$0xf]
      %v162 = vld [vmem:[#allocation7 + $0x120] sm:$0xf]
      %v163 = vld [vmem:[#allocation7 + $0x124] sm:$0xf]
      %v164 = vld [vmem:[#allocation7 + $0x128] sm:$0xf]
      %v165 = vld [vmem:[#allocation7 + $0x12c] sm:$0xf]
      %v166 = vld [vmem:[#allocation7 + $0x130] sm:$0xf]
      %v167 = vld [vmem:[#allocation7 + $0x134] sm:$0xf]
      %v168 = vld [vmem:[#allocation7 + $0x138] sm:$0xf]
      %v169 = vld [vmem:[#allocation7 + $0x13c] sm:$0xf]
      %v170 = vld [vmem:[#allocation7 + $0x140] sm:$0xf]
      %v171 = vld [vmem:[#allocation7 + $0x144] sm:$0xf]
      %v172 = vld [vmem:[#allocation7 + $0x148] sm:$0xf]
      %v173 = vld [vmem:[#allocation7 + $0x14c] sm:$0xf]
      %v174 = vld [vmem:[#allocation7 + $0x150] sm:$0xf]
      %v175 = vld [vmem:[#allocation7 + $0x154] sm:$0xf]
      %v176 = vld [vmem:[#allocation7 + $0x158] sm:$0xf]
      %v177 = vld [vmem:[#allocation7 + $0x15c] sm:$0xf]
      %v178 = vld [vmem:[#allocation7 + $0x160] sm:$0xf]
      %v179 = vld [vmem:[#allocation7 + $0x164] sm:$0xf]
      %v180 = vld [vmem:[#allocation7 + $0x168] sm:$0xf]
      %v181 = vld [vmem:[#allocation7 + $0x16c] sm:$0xf]
      %v182 = vld [vmem:[#allocation7 + $0x170] sm:$0xf]
      %v183 = vld [vmem:[#allocation7 + $0x174] sm:$0xf]
      %v184 = vld [vmem:[#allocation7 + $0x178] sm:$0xf]
      %v185 = vld [vmem:[#allocation7 + $0x17c] sm:$0xf]
      %v186 = vld [vmem:[#allocation7 + $0x180] sm:$0xf]
      %v187 = vld [vmem:[#allocation7 + $0x184] sm:$0xf]
      %v188 = vld [vmem:[#allocation7 + $0x188] sm:$0xf]
      %v189 = vld [vmem:[#allocation7 + $0x18c] sm:$0xf]
      %v190 = vld [vmem:[#allocation7 + $0x190] sm:$0xf]
      %v191 = vld [vmem:[#allocation7 + $0x194] sm:$0xf]
      %v192 = vld [vmem:[#allocation7 + $0x198] sm:$0xf]
      %v193 = vld [vmem:[#allocation7 + $0x19c] sm:$0xf]
      %v194 = vld [vmem:[#allocation7 + $0x1a0] sm:$0xf]
      %v195 = vld [vmem:[#allocation7 + $0x1a4] sm:$0xf]
      %v196 = vld [vmem:[#allocation7 + $0x1a8] sm:$0xf]
      %v197 = vld [vmem:[#allocation7 + $0x1ac] sm:$0xf]
      %v198 = vld [vmem:[#allocation7 + $0x1b0] sm:$0xf]
      %v199 = vld [vmem:[#allocation7 + $0x1b4] sm:$0xf]
      %v200 = vld [vmem:[#allocation7 + $0x1b8] sm:$0xf]
      %v201 = vld [vmem:[#allocation7 + $0x1bc] sm:$0xf]
      %v202 = vld [vmem:[#allocation7 + $0x1c0] sm:$0xf]
      %v203 = vld [vmem:[#allocation7 + $0x1c4] sm:$0xf]
      %v204 = vld [vmem:[#allocation7 + $0x1c8] sm:$0xf]
      %v205 = vld [vmem:[#allocation7 + $0x1cc] sm:$0xf]
      %v206 = vld [vmem:[#allocation7 + $0x1d0] sm:$0xf]
      %v207 = vld [vmem:[#allocation7 + $0x1d4] sm:$0xf]
      %v208 = vld [vmem:[#allocation7 + $0x1d8] sm:$0xf]
      %v209 = vld [vmem:[#allocation7 + $0x1dc] sm:$0xf]
      %v210 = vld [vmem:[#allocation7 + $0x1e0] sm:$0xf]
      %v211 = vld [vmem:[#allocation7 + $0x1e4] sm:$0xf]
      %v212 = vld [vmem:[#allocation7 + $0x1e8] sm:$0xf]
      %v213 = vld [vmem:[#allocation7 + $0x1ec] sm:$0xf]
      %v214 = vld [vmem:[#allocation7 + $0x1f0] sm:$0xf]
      %v215 = vld [vmem:[#allocation7 + $0x1f4] sm:$0xf]
      %v216 = vld [vmem:[#allocation7 + $0x1f8] sm:$0xf]
      %v217 = vld [vmem:[#allocation7 + $0x1fc] sm:$0xf]
      %v346 = vunpack.c.l.b16 %v90
      %v347 = vunpack.c.l.b16 %v91
      %v348 = vunpack.c.l.b16 %v92
      %v349 = vunpack.c.l.b16 %v93
      %v350 = vunpack.c.l.b16 %v94
      %v351 = vunpack.c.l.b16 %v95
      %v352 = vunpack.c.l.b16 %v96
      %v353 = vunpack.c.l.b16 %v97
      %v354 = vunpack.c.l.b16 %v98
      %v355 = vunpack.c.l.b16 %v99
      %v356 = vunpack.c.l.b16 %v100
      %v357 = vunpack.c.l.b16 %v101
      %v358 = vunpack.c.l.b16 %v102
      %v359 = vunpack.c.l.b16 %v103
      %v360 = vunpack.c.l.b16 %v104
      %v361 = vunpack.c.l.b16 %v105
      %v362 = vunpack.c.l.b16 %v106
      %v363 = vunpack.c.l.b16 %v107
      %v364 = vunpack.c.l.b16 %v108
      %v365 = vunpack.c.l.b16 %v109
      %v366 = vunpack.c.l.b16 %v110
      %v367 = vunpack.c.l.b16 %v111
      %v368 = vunpack.c.l.b16 %v112
      %v369 = vunpack.c.l.b16 %v113
      %v370 = vunpack.c.l.b16 %v114
      %v371 = vunpack.c.l.b16 %v115
      %v372 = vunpack.c.l.b16 %v116
      %v373 = vunpack.c.l.b16 %v117
      %v374 = vunpack.c.l.b16 %v118
      %v375 = vunpack.c.l.b16 %v119
      %v376 = vunpack.c.l.b16 %v120
      %v377 = vunpack.c.l.b16 %v121
      %v378 = vunpack.c.l.b16 %v122
      %v379 = vunpack.c.l.b16 %v123
      %v380 = vunpack.c.l.b16 %v124
      %v381 = vunpack.c.l.b16 %v125
      %v382 = vunpack.c.l.b16 %v126
      %v383 = vunpack.c.l.b16 %v127
      %v384 = vunpack.c.l.b16 %v128
      %v385 = vunpack.c.l.b16 %v129
      %v386 = vunpack.c.l.b16 %v130
      %v387 = vunpack.c.l.b16 %v131
      %v388 = vunpack.c.l.b16 %v132
      %v389 = vunpack.c.l.b16 %v133
      %v390 = vunpack.c.l.b16 %v134
      %v391 = vunpack.c.l.b16 %v135
      %v392 = vunpack.c.l.b16 %v136
      %v393 = vunpack.c.l.b16 %v137
      %v394 = vunpack.c.l.b16 %v138
      %v395 = vunpack.c.l.b16 %v139
      %v396 = vunpack.c.l.b16 %v140
      %v397 = vunpack.c.l.b16 %v141
      %v398 = vunpack.c.l.b16 %v142
      %v399 = vunpack.c.l.b16 %v143
      %v400 = vunpack.c.l.b16 %v144
      %v401 = vunpack.c.l.b16 %v145
      %v402 = vunpack.c.l.b16 %v146
      %v403 = vunpack.c.l.b16 %v147
      %v404 = vunpack.c.l.b16 %v148
      %v405 = vunpack.c.l.b16 %v149
      %v406 = vunpack.c.l.b16 %v150
      %v407 = vunpack.c.l.b16 %v151
      %v408 = vunpack.c.l.b16 %v152
      %v409 = vunpack.c.l.b16 %v153
      %v410 = vunpack.c.l.b16 %v154
      %v411 = vunpack.c.l.b16 %v155
      %v412 = vunpack.c.l.b16 %v156
      %v413 = vunpack.c.l.b16 %v157
      %v414 = vunpack.c.l.b16 %v158
      %v415 = vunpack.c.l.b16 %v159
      %v416 = vunpack.c.l.b16 %v160
      %v417 = vunpack.c.l.b16 %v161
      %v418 = vunpack.c.l.b16 %v162
      %v419 = vunpack.c.l.b16 %v163
      %v420 = vunpack.c.l.b16 %v164
      %v421 = vunpack.c.l.b16 %v165
      %v422 = vunpack.c.l.b16 %v166
      %v423 = vunpack.c.l.b16 %v167
      %v424 = vunpack.c.l.b16 %v168
      %v425 = vunpack.c.l.b16 %v169
      %v426 = vunpack.c.l.b16 %v170
      %v427 = vunpack.c.l.b16 %v171
      %v428 = vunpack.c.l.b16 %v172
      %v429 = vunpack.c.l.b16 %v173
      %v430 = vunpack.c.l.b16 %v174
      %v431 = vunpack.c.l.b16 %v175
      %v432 = vunpack.c.l.b16 %v176
      %v433 = vunpack.c.l.b16 %v177
      %v434 = vunpack.c.l.b16 %v178
      %v435 = vunpack.c.l.b16 %v179
      %v436 = vunpack.c.l.b16 %v180
      %v437 = vunpack.c.l.b16 %v181
      %v438 = vunpack.c.l.b16 %v182
      %v439 = vunpack.c.l.b16 %v183
      %v440 = vunpack.c.l.b16 %v184
      %v441 = vunpack.c.l.b16 %v185
      %v442 = vunpack.c.l.b16 %v186
      %v443 = vunpack.c.l.b16 %v187
      %v444 = vunpack.c.l.b16 %v188
      %v445 = vunpack.c.l.b16 %v189
      %v446 = vunpack.c.l.b16 %v190
      %v447 = vunpack.c.l.b16 %v191
      %v448 = vunpack.c.l.b16 %v192
      %v449 = vunpack.c.l.b16 %v193
      %v450 = vunpack.c.l.b16 %v194
      %v451 = vunpack.c.l.b16 %v195
      %v452 = vunpack.c.l.b16 %v196
      %v453 = vunpack.c.l.b16 %v197
      %v454 = vunpack.c.l.b16 %v198
      %v455 = vunpack.c.l.b16 %v199
      %v456 = vunpack.c.l.b16 %v200
      %v457 = vunpack.c.l.b16 %v201
      %v458 = vunpack.c.l.b16 %v202
      %v459 = vunpack.c.l.b16 %v203
      %v460 = vunpack.c.l.b16 %v204
      %v461 = vunpack.c.l.b16 %v205
      %v462 = vunpack.c.l.b16 %v206
      %v463 = vunpack.c.l.b16 %v207
      %v464 = vunpack.c.l.b16 %v208
      %v465 = vunpack.c.l.b16 %v209
      %v466 = vunpack.c.l.b16 %v210
      %v467 = vunpack.c.l.b16 %v211
      %v468 = vunpack.c.l.b16 %v212
      %v469 = vunpack.c.l.b16 %v213
      %v470 = vunpack.c.l.b16 %v214
      %v471 = vunpack.c.l.b16 %v215
      %v472 = vunpack.c.l.b16 %v216
      %v473 = vunpack.c.l.b16 %v217
      %v474 = vpack.c.b16 %v347, %v346
      %v475 = vpack.c.b16 %v349, %v348
      %v476 = vpack.c.b16 %v351, %v350
      %v477 = vpack.c.b16 %v353, %v352
      %v478 = vpack.c.b16 %v355, %v354
      %v479 = vpack.c.b16 %v357, %v356
      %v480 = vpack.c.b16 %v359, %v358
      %v481 = vpack.c.b16 %v361, %v360
      %v482 = vpack.c.b16 %v363, %v362
      %v483 = vpack.c.b16 %v365, %v364
      %v484 = vpack.c.b16 %v367, %v366
      %v485 = vpack.c.b16 %v369, %v368
      %v486 = vpack.c.b16 %v371, %v370
      %v487 = vpack.c.b16 %v373, %v372
      %v488 = vpack.c.b16 %v375, %v374
      %v489 = vpack.c.b16 %v377, %v376
      %v490 = vpack.c.b16 %v379, %v378
      %v491 = vpack.c.b16 %v381, %v380
      %v492 = vpack.c.b16 %v383, %v382
      %v493 = vpack.c.b16 %v385, %v384
      %v494 = vpack.c.b16 %v387, %v386
      %v495 = vpack.c.b16 %v389, %v388
      %v496 = vpack.c.b16 %v391, %v390
      %v497 = vpack.c.b16 %v393, %v392
      %v498 = vpack.c.b16 %v395, %v394
      %v499 = vpack.c.b16 %v397, %v396
      %v500 = vpack.c.b16 %v399, %v398
      %v501 = vpack.c.b16 %v401, %v400
      %v502 = vpack.c.b16 %v403, %v402
      %v503 = vpack.c.b16 %v405, %v404
      %v504 = vpack.c.b16 %v407, %v406
      %v505 = vpack.c.b16 %v409, %v408
      %v506 = vpack.c.b16 %v411, %v410
      %v507 = vpack.c.b16 %v413, %v412
      %v508 = vpack.c.b16 %v415, %v414
      %v509 = vpack.c.b16 %v417, %v416
      %v510 = vpack.c.b16 %v419, %v418
      %v511 = vpack.c.b16 %v421, %v420
      %v512 = vpack.c.b16 %v423, %v422
      %v513 = vpack.c.b16 %v425, %v424
      %v514 = vpack.c.b16 %v427, %v426
      %v515 = vpack.c.b16 %v429, %v428
      %v516 = vpack.c.b16 %v431, %v430
      %v517 = vpack.c.b16 %v433, %v432
      %v518 = vpack.c.b16 %v435, %v434
      %v519 = vpack.c.b16 %v437, %v436
      %v520 = vpack.c.b16 %v439, %v438
      %v521 = vpack.c.b16 %v441, %v440
      %v522 = vpack.c.b16 %v443, %v442
      %v523 = vpack.c.b16 %v445, %v444
      %v524 = vpack.c.b16 %v447, %v446
      %v525 = vpack.c.b16 %v449, %v448
      %v526 = vpack.c.b16 %v451, %v450
      %v527 = vpack.c.b16 %v453, %v452
      %v528 = vpack.c.b16 %v455, %v454
      %v529 = vpack.c.b16 %v457, %v456
      %v530 = vpack.c.b16 %v459, %v458
      %v531 = vpack.c.b16 %v461, %v460
      %v532 = vpack.c.b16 %v463, %v462
      %v533 = vpack.c.b16 %v465, %v464
      %v534 = vpack.c.b16 %v467, %v466
      %v535 = vpack.c.b16 %v469, %v468
      %v536 = vpack.c.b16 %v471, %v470
      %v537 = vpack.c.b16 %v473, %v472
      %602 = vmatprep.subr.bf16.mxu0 0
      %603 = vmatpush1.bf16.msra.mxu0 %v481
      %604 = vmatprep.subr.bf16.mxu0 0
      %605 = vmatpush1.bf16.msra.mxu0 %v480
      %606 = vmatprep.subr.bf16.mxu0 0
      %607 = vmatpush1.bf16.msra.mxu0 %v479
      %608 = vmatprep.subr.bf16.mxu0 0
      %609 = vmatpush1.bf16.msra.mxu0 %v478
      %610 = vmatprep.subr.bf16.mxu0 0
      %611 = vmatpush1.bf16.msra.mxu0 %v477
      %612 = vmatprep.subr.bf16.mxu0 0
      %613 = vmatpush1.bf16.msra.mxu0 %v476
      %614 = vmatprep.subr.bf16.mxu0 0
      %615 = vmatpush1.bf16.msra.mxu0 %v475
      %616 = vmatprep.subr.bf16.mxu0 0
      %617 = vmatpush1.bf16.msra.mxu0 %v474
      %618 = vmatprep.subr.bf16.mxu0 0
      %619 = vmatpush2.bf16.msra.mxu0 %v489
      %620 = vmatprep.subr.bf16.mxu0 0
      %621 = vmatpush2.bf16.msra.mxu0 %v488
      %622 = vmatprep.subr.bf16.mxu0 0
      %623 = vmatpush2.bf16.msra.mxu0 %v487
      %624 = vmatprep.subr.bf16.mxu0 0
      %625 = vmatpush2.bf16.msra.mxu0 %v486
      %626 = vmatprep.subr.bf16.mxu0 0
      %627 = vmatpush2.bf16.msra.mxu0 %v485
      %628 = vmatprep.subr.bf16.mxu0 0
      %629 = vmatpush2.bf16.msra.mxu0 %v484
      %630 = vmatprep.subr.bf16.mxu0 0
      %631 = vmatpush2.bf16.msra.mxu0 %v483
      %632 = vmatprep.subr.bf16.mxu0 0
      %633 = vmatpush2.bf16.msra.mxu0 %v482
      %634 = vmatprep.mubr.bf16.mxu0 %v83
      %635 = vmatmul.mubr.bf16.gmra.mxu0 %v82
      %v636 = vpop.f32.mrf.mxu0
      %v637 = vadd.f32 0.0, %v636
      %v638 = vpop.f32.mrf.mxu0
      %v639 = vpop.f32.mrf.mxu0
      %v640 = vpop.f32.mrf.mxu0
      %641 = vdwg.mxu0
      %642 = vmatprep.subr.bf16.mxu0 0
      %643 = vmatpush1.bf16.msra.mxu0 %v497
      %644 = vmatprep.subr.bf16.mxu0 0
      %645 = vmatpush1.bf16.msra.mxu0 %v496
      %646 = vmatprep.subr.bf16.mxu0 0
      %647 = vmatpush1.bf16.msra.mxu0 %v495
      %648 = vmatprep.subr.bf16.mxu0 0
      %649 = vmatpush1.bf16.msra.mxu0 %v494
      %650 = vmatprep.subr.bf16.mxu0 0
      %651 = vmatpush1.bf16.msra.mxu0 %v493
      %652 = vmatprep.subr.bf16.mxu0 0
      %653 = vmatpush1.bf16.msra.mxu0 %v492
      %654 = vmatprep.subr.bf16.mxu0 0
      %655 = vmatpush1.bf16.msra.mxu0 %v491
      %656 = vmatprep.subr.bf16.mxu0 0
      %657 = vmatpush1.bf16.msra.mxu0 %v490
      %658 = vmatprep.subr.bf16.mxu0 0
      %659 = vmatpush2.bf16.msra.mxu0 %v505
      %660 = vmatprep.subr.bf16.mxu0 0
      %661 = vmatpush2.bf16.msra.mxu0 %v504
      %662 = vmatprep.subr.bf16.mxu0 0
      %663 = vmatpush2.bf16.msra.mxu0 %v503
      %664 = vmatprep.subr.bf16.mxu0 0
      %665 = vmatpush2.bf16.msra.mxu0 %v502
      %666 = vmatprep.subr.bf16.mxu0 0
      %667 = vmatpush2.bf16.msra.mxu0 %v501
      %668 = vmatprep.subr.bf16.mxu0 0
      %669 = vmatpush2.bf16.msra.mxu0 %v500
      %670 = vmatprep.subr.bf16.mxu0 0
      %671 = vmatpush2.bf16.msra.mxu0 %v499
      %672 = vmatprep.subr.bf16.mxu0 0
      %673 = vmatpush2.bf16.msra.mxu0 %v498
      %674 = vmatprep.mubr.bf16.mxu0 %v85
      %675 = vmatmul.mubr.bf16.gmra.mxu0 %v84
      %v676 = vpop.f32.mrf.mxu0
      %v677 = vadd.f32 %v637, %v676
      %v678 = vpop.f32.mrf.mxu0
      %v679 = vpop.f32.mrf.mxu0
      %v680 = vpop.f32.mrf.mxu0
      %681 = vdwg.mxu0
      %682 = vmatprep.subr.bf16.mxu0 0
      %683 = vmatpush1.bf16.msra.mxu0 %v513
      %684 = vmatprep.subr.bf16.mxu0 0
      %685 = vmatpush1.bf16.msra.mxu0 %v512
      %686 = vmatprep.subr.bf16.mxu0 0
      %687 = vmatpush1.bf16.msra.mxu0 %v511
      %688 = vmatprep.subr.bf16.mxu0 0
      %689 = vmatpush1.bf16.msra.mxu0 %v510
      %690 = vmatprep.subr.bf16.mxu0 0
      %691 = vmatpush1.bf16.msra.mxu0 %v509
      %692 = vmatprep.subr.bf16.mxu0 0
      %693 = vmatpush1.bf16.msra.mxu0 %v508
      %694 = vmatprep.subr.bf16.mxu0 0
      %695 = vmatpush1.bf16.msra.mxu0 %v507
      %696 = vmatprep.subr.bf16.mxu0 0
      %697 = vmatpush1.bf16.msra.mxu0 %v506
      %698 = vmatprep.subr.bf16.mxu0 0
      %699 = vmatpush2.bf16.msra.mxu0 %v521
      %700 = vmatprep.subr.bf16.mxu0 0
      %701 = vmatpush2.bf16.msra.mxu0 %v520
      %702 = vmatprep.subr.bf16.mxu0 0
      %703 = vmatpush2.bf16.msra.mxu0 %v519
      %704 = vmatprep.subr.bf16.mxu0 0
      %705 = vmatpush2.bf16.msra.mxu0 %v518
      %706 = vmatprep.subr.bf16.mxu0 0
      %707 = vmatpush2.bf16.msra.mxu0 %v517
      %708 = vmatprep.subr.bf16.mxu0 0
      %709 = vmatpush2.bf16.msra.mxu0 %v516
      %710 = vmatprep.subr.bf16.mxu0 0
      %711 = vmatpush2.bf16.msra.mxu0 %v515
      %712 = vmatprep.subr.bf16.mxu0 0
      %713 = vmatpush2.bf16.msra.mxu0 %v514
      %714 = vmatprep.mubr.bf16.mxu0 %v87
      %715 = vmatmul.mubr.bf16.gmra.mxu0 %v86
      %v716 = vpop.f32.mrf.mxu0
      %v717 = vadd.f32 %v677, %v716
      %v718 = vpop.f32.mrf.mxu0
      %v719 = vpop.f32.mrf.mxu0
      %v720 = vpop.f32.mrf.mxu0
      %721 = vdwg.mxu0
      %722 = vmatprep.subr.bf16.mxu0 0
      %723 = vmatpush1.bf16.msra.mxu0 %v529
      %724 = vmatprep.subr.bf16.mxu0 0
      %725 = vmatpush1.bf16.msra.mxu0 %v528
      %726 = vmatprep.subr.bf16.mxu0 0
      %727 = vmatpush1.bf16.msra.mxu0 %v527
      %728 = vmatprep.subr.bf16.mxu0 0
      %729 = vmatpush1.bf16.msra.mxu0 %v526
      %730 = vmatprep.subr.bf16.mxu0 0
      %731 = vmatpush1.bf16.msra.mxu0 %v525
      %732 = vmatprep.subr.bf16.mxu0 0
      %733 = vmatpush1.bf16.msra.mxu0 %v524
      %734 = vmatprep.subr.bf16.mxu0 0
      %735 = vmatpush1.bf16.msra.mxu0 %v523
      %736 = vmatprep.subr.bf16.mxu0 0
      %737 = vmatpush1.bf16.msra.mxu0 %v522
      %738 = vmatprep.subr.bf16.mxu0 0
      %739 = vmatpush2.bf16.msra.mxu0 %v537
      %740 = vmatprep.subr.bf16.mxu0 0
      %741 = vmatpush2.bf16.msra.mxu0 %v536
      %742 = vmatprep.subr.bf16.mxu0 0
      %743 = vmatpush2.bf16.msra.mxu0 %v535
      %744 = vmatprep.subr.bf16.mxu0 0
      %745 = vmatpush2.bf16.msra.mxu0 %v534
      %746 = vmatprep.subr.bf16.mxu0 0
      %747 = vmatpush2.bf16.msra.mxu0 %v533
      %748 = vmatprep.subr.bf16.mxu0 0
      %749 = vmatpush2.bf16.msra.mxu0 %v532
      %750 = vmatprep.subr.bf16.mxu0 0
      %751 = vmatpush2.bf16.msra.mxu0 %v531
      %752 = vmatprep.subr.bf16.mxu0 0
      %753 = vmatpush2.bf16.msra.mxu0 %v530
      %754 = vmatprep.mubr.bf16.mxu0 %v89
      %755 = vmatmul.mubr.bf16.gmra.mxu0 %v88
      %v756 = vpop.f32.mrf.mxu0
      %v757 = vadd.f32 %v717, %v756
      %v758 = vpop.f32.mrf.mxu0
      %v759 = vpop.f32.mrf.mxu0
      %v760 = vpop.f32.mrf.mxu0
      %761 = vdwg.mxu0
      %v762 = vadd.f32 %v73, %v757
      %763 = vst [vmem:[#allocation2] sm:$0xff] %v762
    $region41: #{tpu_custom_call.1} parent=1 // pred_fallthru
      _
    // Predicated region
    $region42: #{tpu_custom_call.1} parent=1 // pred_check
      %p764 = pneg %p64
    $region43: #{tpu_custom_call.1} parent=1 // pred_check_branch
      %766 = sbr.rel (%p764) target = $region45
    $region44: #{tpu_custom_call.1} parent=1 // pred_region
      %v767 = vld [vmem:[#allocation2] sm:$0xff]
      %v768 = vld [vmem:[%s2] sm:$0x1]
      %v770 = vlaneseq
      %v771 = vshrl.u32 %v770, 7
      %v772 = vsub.s32 0, %v771
      %v773 = vrot.slane %v768, %v772
      %v775 = vadd.f32 %v767, %v773
      %776 = vst [vmem:[#allocation2] sm:$0xff] %v775
      %v777 = vld [vmem:[#allocation2] sm:$0xff]
      %v778 = vmul.f32 %v777, %v777
      %779 = vadd.xlane.f32.xlu0 %v778
      %v780 = vpop.xlane.xlu0 %779
      %v781 = vmax.f32 %v780, 1e-24
      %v782 = vrsqrt.pop %v781
      %v783 = vmul.f32 %v777, %v782
      %784 = vst [vmem:[#allocation2] sm:$0xff] %v783
      %v785 = vld [vmem:[#allocation2] sm:$0xff]
      %786 = vst [vmem:[#allocation11] sm:$0xff] %v785
      %v787 = vld [vmem:[#allocation2] sm:$0xff]
      %v788 = vpack.c.bf16 %v787, %v787
      %789 = vst [vmem:[#allocation3] sm:$0xf] %v788
    $region45: #{tpu_custom_call.1} parent=1 // pred_fallthru
      _
    %p790 = scmp.ge.s32.totalorder 0, 0
    // Predicated region
    $region46: #{tpu_custom_call.1} parent=1 // pred_check
      %p791 = pneg %p790
    $region47: #{tpu_custom_call.1} parent=1 // pred_check_branch
      %793 = sbr.rel (%p791) target = $region49
    $region48: #{tpu_custom_call.1} parent=1 // pred_region
      %v794 = vld [vmem:[#allocation3] sm:$0xf]
      %v795 = vld [vmem:[#allocation9] sm:$0xf]
      %v796 = vld [vmem:[#allocation9 + $0x4] sm:$0xf]
      %v797 = vld [vmem:[#allocation9 + $0x8] sm:$0xf]
      %v798 = vld [vmem:[#allocation9 + $0xc] sm:$0xf]
      %v799 = vld [vmem:[#allocation9 + $0x10] sm:$0xf]
      %v800 = vld [vmem:[#allocation9 + $0x14] sm:$0xf]
      %v801 = vld [vmem:[#allocation9 + $0x18] sm:$0xf]
      %v802 = vld [vmem:[#allocation9 + $0x1c] sm:$0xf]
      %v803 = vld [vmem:[#allocation9 + $0x20] sm:$0xf]
      %v804 = vld [vmem:[#allocation9 + $0x24] sm:$0xf]
      %v805 = vld [vmem:[#allocation9 + $0x28] sm:$0xf]
      %v806 = vld [vmem:[#allocation9 + $0x2c] sm:$0xf]
      %v807 = vld [vmem:[#allocation9 + $0x30] sm:$0xf]
      %v808 = vld [vmem:[#allocation9 + $0x34] sm:$0xf]
      %v809 = vld [vmem:[#allocation9 + $0x38] sm:$0xf]
      %v810 = vld [vmem:[#allocation9 + $0x3c] sm:$0xf]
      %v811 = vld [vmem:[%s4] sm:$0x1]
      %v813 = vlaneseq
      %v814 = vshrl.u32 %v813, 7
      %v815 = vsub.s32 0, %v814
      %v816 = vrot.slane %v811, %v815
      %v834 = vunpack.c.l.b16 %v795
      %v835 = vunpack.c.l.b16 %v796
      %v836 = vunpack.c.l.b16 %v797
      %v837 = vunpack.c.l.b16 %v798
      %v838 = vunpack.c.l.b16 %v799
      %v839 = vunpack.c.l.b16 %v800
      %v840 = vunpack.c.l.b16 %v801
      %v841 = vunpack.c.l.b16 %v802
      %v842 = vunpack.c.l.b16 %v803
      %v843 = vunpack.c.l.b16 %v804
      %v844 = vunpack.c.l.b16 %v805
      %v845 = vunpack.c.l.b16 %v806
      %v846 = vunpack.c.l.b16 %v807
      %v847 = vunpack.c.l.b16 %v808
      %v848 = vunpack.c.l.b16 %v809
      %v849 = vunpack.c.l.b16 %v810
      %v850 = vpack.c.b16 %v835, %v834
      %v851 = vpack.c.b16 %v837, %v836
      %v852 = vpack.c.b16 %v839, %v838
      %v853 = vpack.c.b16 %v841, %v840
      %v854 = vpack.c.b16 %v843, %v842
      %v855 = vpack.c.b16 %v845, %v844
      %v856 = vpack.c.b16 %v847, %v846
      %v857 = vpack.c.b16 %v849, %v848
      %866 = vmatprep.subr.bf16.mxu0 0
      %867 = vmatpush1.bf16.msra.mxu0 %v857
      %868 = vmatprep.subr.bf16.mxu0 0
      %869 = vmatpush1.bf16.msra.mxu0 %v856
      %870 = vmatprep.subr.bf16.mxu0 0
      %871 = vmatpush1.bf16.msra.mxu0 %v855
      %872 = vmatprep.subr.bf16.mxu0 0
      %873 = vmatpush1.bf16.msra.mxu0 %v854
      %874 = vmatprep.subr.bf16.mxu0 0
      %875 = vmatpush1.bf16.msra.mxu0 %v853
      %876 = vmatprep.subr.bf16.mxu0 0
      %877 = vmatpush1.bf16.msra.mxu0 %v852
      %878 = vmatprep.subr.bf16.mxu0 0
      %879 = vmatpush1.bf16.msra.mxu0 %v851
      %880 = vmatprep.subr.bf16.mxu0 0
      %881 = vmatpush1.bf16.msra.mxu0 %v850
      %882 = vmatprep.subr.bf16.mxu0 0
      %883 = vmatpush2.bf16.msra.mxu0 0
      %884 = vmatprep.subr.bf16.mxu0 0
      %885 = vmatpush2.bf16.msra.mxu0 0
      %886 = vmatprep.subr.bf16.mxu0 0
      %887 = vmatpush2.bf16.msra.mxu0 0
      %888 = vmatprep.subr.bf16.mxu0 0
      %889 = vmatpush2.bf16.msra.mxu0 0
      %890 = vmatprep.subr.bf16.mxu0 0
      %891 = vmatpush2.bf16.msra.mxu0 0
      %892 = vmatprep.subr.bf16.mxu0 0
      %893 = vmatpush2.bf16.msra.mxu0 0
      %894 = vmatprep.subr.bf16.mxu0 0
      %895 = vmatpush2.bf16.msra.mxu0 0
      %896 = vmatprep.subr.bf16.mxu0 0
      %897 = vmatpush2.bf16.msra.mxu0 0
      %898 = vmatprep.mubr.bf16.mxu0 0
      %899 = vmatmul.mubr.bf16.gmra.mxu0 %v794
      %v900 = vpop.f32.mrf.mxu0
      %v901 = vadd.f32 %v816, %v900
      %v902 = vpop.f32.mrf.mxu0
      %v903 = vpop.f32.mrf.mxu0
      %v904 = vpop.f32.mrf.mxu0
      %905 = vdwg.mxu0
      %906 = vst [vmem:[#allocation10] sm:$0xff] %v901
    $region49: #{tpu_custom_call.1} parent=1 // pred_fallthru
      _
    // Predicated region
    $region50: #{tpu_custom_call.1} parent=1 // pred_check
      _
    $region51: #{tpu_custom_call.1} parent=1 // pred_check_branch
      %908 = sbr.rel (0) target = $region53
    $region52: #{tpu_custom_call.1} parent=1 // pred_region
      %s910 = ssub.s32 128, 128
      %911 = vsyncadd [#allocation6], %s910
      %s913 = sshll.u32 [#allocation10], 4
      %s914 = int_to_ptr.vmem [resolvable:$true] %s913
      %916 = dma.vmem_to_hbm [thread:$0]  %s914, 128, %s5, [#allocation6]
    $region53: #{tpu_custom_call.1} parent=1 // pred_fallthru
      _
    // Predicated region
    $region54: #{tpu_custom_call.1} parent=1 // pred_check
      _
    $region55: #{tpu_custom_call.1} parent=1 // pred_check_branch
      %918 = sbr.rel (0) target = $region57
    $region56: #{tpu_custom_call.1} parent=1 // pred_region
      %s920 = ssub.s32 128, 128
      %921 = vsyncadd [#allocation12], %s920
      %s923 = sshll.u32 [#allocation11], 4
      %s924 = int_to_ptr.vmem [resolvable:$true] %s923
      %926 = dma.vmem_to_hbm [thread:$0]  %s924, 128, %s6, [#allocation12]
    $region57: #{tpu_custom_call.1} parent=1 // pred_fallthru
      _
    // Predicated region
    $region58: #{tpu_custom_call.1} parent=1 // pred_check
      _
    $region59: #{tpu_custom_call.1} parent=1 // pred_check_branch
      %928 = sbr.rel (0) target = $region61
    $region60: #{tpu_custom_call.1} parent=1 // pred_region
      %929 = dma.done [#allocation6], 128
    $region61: #{tpu_custom_call.1} parent=1 // pred_fallthru
      _
    // Predicated region
    $region62: #{tpu_custom_call.1} parent=1 // pred_check
      _
    $region63: #{tpu_custom_call.1} parent=1 // pred_check_branch
      %931 = sbr.rel (0) target = $region65
    $region64: #{tpu_custom_call.1} parent=1 // pred_region
      %932 = dma.done [#allocation12], 128
    $region65: #{tpu_custom_call.1} parent=1 // pred_fallthru
      _
    %933 = vsyncpa [#allocation5], 1
    %934 = vsyncpa [#allocation8], 1
    %935 = vsyncpa [#allocation6], 1
    %936 = vsyncpa [#allocation12], 1

</llo_original>
